<compile_context>
chip_gen: v6e
topology: v6e:2x2x1
jax: 0.10.0
libtpu: 0.0.40
codegen_flags: <defaults>
</compile_context>

<pallas_src>
import functools

import jax
import jax.numpy as jnp
from jax.experimental import pallas as pl
from jax.experimental.pallas import tpu as pltpu

N_EMBD = 384          # n_embd in the PyTorch module
BLOCK_SIZE = 256      # max sequence length (tril buffer size)
LANE = 128            # TPU lane width


def _head_kernel(x_ref, w_ref, o_ref, *, hp, bb):
    # x_ref: (Bb, T, C)   w_ref: (C, 3*Hp) bf16   o_ref: (Bb, T, Hp) bf16
    T = x_ref.shape[1]
    C = x_ref.shape[2]

    x = x_ref[...]
    if x.dtype != jnp.bfloat16:
        x = x.astype(jnp.bfloat16)
    # Merge (Bb, T) -> Bb*T: trailing dims are (8,128)-tile aligned, so this is
    # a layout-preserving reshape, and it gives the MXU a bigger M dimension.
    x2d = x.reshape(bb * T, C)

    # Fused QKV projection for the whole batch block, bf16 MXU, f32 accum.
    qkv = jnp.dot(x2d, w_ref[...],
                  preferred_element_type=jnp.float32)            # (Bb*T, 3*Hp)
    qkv = qkv.reshape(bb, T, 3 * hp)
    k = qkv[:, :, 0 * hp:1 * hp].astype(jnp.bfloat16)            # (Bb, T, Hp)
    q = qkv[:, :, 1 * hp:2 * hp].astype(jnp.bfloat16)            # scale already in W_q
    v = qkv[:, :, 2 * hp:3 * hp].astype(jnp.bfloat16)

    # Batched attention scores q @ k^T (NT contraction, no explicit transpose).
    wei = jnp.einsum("btd,bsd->bts", q, k,
                     preferred_element_type=jnp.float32)         # (Bb, T, T)

    # Causal mask built once per grid step, broadcast over the batch block.
    row = jax.lax.broadcasted_iota(jnp.int32, (T, T), 0)
    col = jax.lax.broadcasted_iota(jnp.int32, (T, T), 1)
    wei = jnp.where((row >= col)[None, :, :], wei, -jnp.inf)

    # Numerically stable softmax in f32; denominator folded into the output.
    m = jnp.max(wei, axis=-1, keepdims=True)
    e = jnp.exp(wei - m)                                         # (Bb, T, T)
    s = jnp.sum(e, axis=-1, keepdims=True)                       # (Bb, T, 1)

    # dropout(softmax) == softmax (eval mode)

    out = jnp.einsum("bts,bsd->btd", e.astype(jnp.bfloat16), v,
                     preferred_element_type=jnp.float32)         # (Bb, T, Hp)
    out = out * pl.reciprocal(s, approx=True)                    # (T,Hp) mul, EUP recip
    o_ref[...] = out.astype(o_ref.dtype)


def make_fused_qkv_weight(w_key, w_query, w_value):
    """Build the fused, padded, bf16 QKV weight ONCE (parameter-setup time).

    w_*: (H, C) as in nn.Linear(C, H, bias=False).
    Returns ((C, 3*Hp) bf16 weight laid out [k | q | v], Hp).
    The C**-0.5 attention scale is folded into the query weight in f32.
    """
    H, C = w_key.shape
    assert C == N_EMBD
    hp = ((H + LANE - 1) // LANE) * LANE
    scale = float(C) ** -0.5                                     # C = n_embd (as in module)

    def prep(w, s=1.0):
        wt = (jnp.asarray(w, jnp.float32) * s).T                 # scale in f32, then (C, H)
        if H < hp:
            wt = jnp.pad(wt, ((0, 0), (0, hp - H)))
        return wt.astype(jnp.bfloat16)

    w_qkv = jnp.concatenate([prep(w_key), prep(w_query, scale), prep(w_value)],
                            axis=1)                              # (C, 3*Hp)
    return w_qkv, hp


def _pick_batch_block(B, max_bb=8):
    """Largest divisor of B <= max_bb, preferring >= 2 grid steps (v7x 2 TCs)."""
    candidates = [bb for bb in range(1, min(B, max_bb) + 1) if B % bb == 0]
    preferred = [bb for bb in candidates if B // bb >= 2]
    return max(preferred) if preferred else max(candidates)


def head_forward(x, w_qkv, head_size, *, batch_block=None):
    """x: (B, T, C); w_qkv: fused bf16 weight from make_fused_qkv_weight."""
    B, T, C = x.shape
    hp = w_qkv.shape[1] // 3
    assert w_qkv.shape[0] == C
    assert T <= BLOCK_SIZE and T % 8 == 0, "T must be <=256 and a multiple of 8"

    bb = batch_block if batch_block is not None else _pick_batch_block(B)
    assert B % bb == 0

    kernel = functools.partial(_head_kernel, hp=hp, bb=bb)

    cost = pl.CostEstimate(
        flops=int(2 * B * T * (C * 3 * hp + 2 * T * hp)),
        transcendentals=int(B * T * (T + 1)),
        bytes_accessed=int(x.size * x.dtype.itemsize + w_qkv.size * 2
                           + B * T * hp * 2),
    )

    out_padded = pl.pallas_call(
        kernel,
        out_shape=jax.ShapeDtypeStruct((B, T, hp), jnp.bfloat16),
        grid_spec=pltpu.PrefetchScalarGridSpec(
            num_scalar_prefetch=0,
            grid=(B // bb,),
            in_specs=[
                pl.BlockSpec((bb, T, C), lambda i: (i, 0, 0)),   # batch block of x
                pl.BlockSpec((C, 3 * hp), lambda i: (0, 0)),     # fused QKV weight
            ],
            out_specs=pl.BlockSpec((bb, T, hp), lambda i: (i, 0, 0)),
        ),
        compiler_params=pltpu.CompilerParams(
            dimension_semantics=("parallel",),
        ),
        cost_estimate=cost,
    )(x, w_qkv)

    # TODO(synk): in a multi-head layer, fuse all heads into one kernel so the
    # concatenated head dim is a multiple of 128 and this slice (an extra HBM
    # pass over the output) disappears.
    return out_padded[:, :, :head_size]


def head_reference(x, w_key, w_query, w_value):
    """Pure-JAX f32 reference mirroring the PyTorch forward (eval mode)."""
    B, T, C = x.shape
    k = x @ w_key.T
    q = x @ w_query.T
    v = x @ w_value.T
    wei = (q @ jnp.swapaxes(k, -2, -1)) * (C ** -0.5)
    mask = jnp.tril(jnp.ones((T, T), dtype=bool))
    wei = jnp.where(mask[None, :, :], wei, -jnp.inf)
    wei = jax.nn.softmax(wei, axis=-1)
    return wei @ v


if __name__ == "__main__":
    B, T, C, HEAD_SIZE = 4, 128, N_EMBD, 64

    key = jax.random.PRNGKey(0)
    kx, kk, kq, kv = jax.random.split(key, 4)

    x = jax.random.normal(kx, (B, T, C), dtype=jnp.float32)
    # deterministic Linear weights, shape (head_size, n_embd) as in nn.Linear
    w_key = jax.random.normal(kk, (HEAD_SIZE, C), dtype=jnp.float32) * (C ** -0.5)
    w_query = jax.random.normal(kq, (HEAD_SIZE, C), dtype=jnp.float32) * (C ** -0.5)
    w_value = jax.random.normal(kv, (HEAD_SIZE, C), dtype=jnp.float32) * (C ** -0.5)

    # Weight prep happens once, outside the forward path.
    w_qkv, _ = make_fused_qkv_weight(w_key, w_query, w_value)

    out = head_forward(x, w_qkv, HEAD_SIZE)
    out = jax.block_until_ready(out)

    ref = head_reference(x, w_key, w_query, w_value)
    assert out.shape == (B, T, HEAD_SIZE)
    # bf16 MXU operands / bf16 output (f32 accumulation) + approx reciprocal
    out_f32 = out.astype(jnp.float32)
    assert jnp.allclose(out_f32, ref, atol=4e-2, rtol=4e-2), (
        f"max abs err {jnp.max(jnp.abs(out_f32 - ref))}")

    print("KERNEL_OK")
</pallas_src>

<mosaic_0001>
module attributes {stable_mosaic.version = 11 : i64} {
  func.func @_head_kernel(%arg0: i32, %arg1: memref<2x128x384xf32, #tpu.memory_space<vmem>>, %arg2: memref<384x384xbf16, #tpu.memory_space<vmem>>, %arg3: memref<2x128x128xbf16, #tpu.memory_space<vmem>>) attributes {dimension_semantics = [#tpu.dimension_semantics<parallel>], iteration_bounds = array<i64: 2>, scalar_prefetch = 0 : i64, scratch_operands = 0 : i64, tpu.core_type = #tpu.core_type<tc>, window_params = [{transform_indices = @transform_0, window_bounds = array<i64: 2, 128, 384>}, {pipeline_mode = #tpu.pipeline_mode<synchronous>, transform_indices = @transform_1, window_bounds = array<i64: 384, 384>}, {transform_indices = @transform_2, window_bounds = array<i64: 2, 128, 128>}]} {
    %c0 = arith.constant 0 : index
    %c0_0 = arith.constant 0 : index
    %c0_1 = arith.constant 0 : index
    %0 = vector.load %arg1[%c0, %c0_0, %c0_1] : memref<2x128x384xf32, #tpu.memory_space<vmem>>, vector<2x128x384xf32>
    %1 = arith.truncf %0 : vector<2x128x384xf32> to vector<2x128x384xbf16>
    %2 = vector.shape_cast %1 : vector<2x128x384xbf16> to vector<256x384xbf16>
    %c0_2 = arith.constant 0 : index
    %c0_3 = arith.constant 0 : index
    %3 = vector.load %arg2[%c0_2, %c0_3] : memref<384x384xbf16, #tpu.memory_space<vmem>>, vector<384x384xbf16>
    %cst = arith.constant dense<0.000000e+00> : vector<256x384xf32>
    %4 = tpu.matmul %2, %3, %cst {dimension_numbers = #tpu.dot_dimension_numbers<[1], [0], [0], [1], [0, 0, 1, 1], [], []>} : vector<256x384xbf16>, vector<384x384xbf16>, vector<256x384xf32> -> vector<256x384xf32>
    %5 = vector.shape_cast %4 : vector<256x384xf32> to vector<2x128x384xf32>
    %6 = vector.extract_strided_slice %5 {offsets = [0, 0, 0], sizes = [2, 128, 128], strides = [1, 1, 1]} : vector<2x128x384xf32> to vector<2x128x128xf32>
    %7 = arith.truncf %6 : vector<2x128x128xf32> to vector<2x128x128xbf16>
    %8 = vector.extract_strided_slice %5 {offsets = [0, 0, 128], sizes = [2, 128, 128], strides = [1, 1, 1]} : vector<2x128x384xf32> to vector<2x128x128xf32>
    %9 = arith.truncf %8 : vector<2x128x128xf32> to vector<2x128x128xbf16>
    %10 = vector.extract_strided_slice %5 {offsets = [0, 0, 256], sizes = [2, 128, 128], strides = [1, 1, 1]} : vector<2x128x384xf32> to vector<2x128x128xf32>
    %11 = arith.truncf %10 : vector<2x128x128xf32> to vector<2x128x128xbf16>
    "tpu.trace_start"() <{level = 10 : i32, message = "btd,bsd->bts"}> : () -> ()
    %cst_4 = arith.constant dense<0.000000e+00> : vector<2x128x128xf32>
    %12 = tpu.matmul %9, %7, %cst_4 {dimension_numbers = #tpu.dot_dimension_numbers<[2], [2], [1], [1], [0, 0, 0, 1, 1, 1], [0], [0]>} : vector<2x128x128xbf16>, vector<2x128x128xbf16>, vector<2x128x128xf32> -> vector<2x128x128xf32>
    "tpu.trace_stop"() : () -> ()
    %13 = tpu.iota {dimensions = array<i32: 0>} : vector<128x128xi32>
    %14 = tpu.iota {dimensions = array<i32: 1>} : vector<128x128xi32>
    %15 = arith.cmpi sge, %13, %14 : vector<128x128xi32>
    %16 = vector.shape_cast %15 : vector<128x128xi1> to vector<1x128x128xi1>
    %cst_5 = arith.constant 0xFF800000 : f32
    %17 = vector.shape_cast %16 : vector<1x128x128xi1> to vector<1x128x128xi1>
    %18 = vector.broadcast %17 : vector<1x128x128xi1> to vector<2x128x128xi1>
    %19 = vector.broadcast %cst_5 : f32 to vector<2x128x128xf32>
    %20 = arith.select %18, %12, %19 : vector<2x128x128xi1>, vector<2x128x128xf32>
    %cst_6 = arith.constant dense<0xFF800000> : vector<2x128xf32>
    %21 = vector.multi_reduction <maximumf>, %20, %cst_6 [2] : vector<2x128x128xf32> to vector<2x128xf32>
    %22 = vector.shape_cast %21 : vector<2x128xf32> to vector<2x128x1xf32>
    %23 = vector.broadcast %22 : vector<2x128x1xf32> to vector<2x128x128xf32>
    %24 = arith.subf %20, %23 : vector<2x128x128xf32>
    %25 = math.exp %24 : vector<2x128x128xf32>
    %cst_7 = arith.constant dense<0.000000e+00> : vector<2x128xf32>
    %26 = vector.multi_reduction <add>, %25, %cst_7 [2] : vector<2x128x128xf32> to vector<2x128xf32>
    %27 = vector.shape_cast %26 : vector<2x128xf32> to vector<2x128x1xf32>
    %28 = arith.truncf %25 : vector<2x128x128xf32> to vector<2x128x128xbf16>
    "tpu.trace_start"() <{level = 10 : i32, message = "bts,bsd->btd"}> : () -> ()
    %cst_8 = arith.constant dense<0.000000e+00> : vector<2x128x128xf32>
    %29 = tpu.matmul %28, %11, %cst_8 {dimension_numbers = #tpu.dot_dimension_numbers<[2], [1], [1], [2], [0, 0, 0, 1, 1, 2], [0], [0]>} : vector<2x128x128xbf16>, vector<2x128x128xbf16>, vector<2x128x128xf32> -> vector<2x128x128xf32>
    "tpu.trace_stop"() : () -> ()
    %30 = tpu.reciprocal %27 {approx = true} : vector<2x128x1xf32> -> vector<2x128x1xf32>
    %31 = vector.broadcast %30 : vector<2x128x1xf32> to vector<2x128x128xf32>
    %32 = arith.mulf %29, %31 : vector<2x128x128xf32>
    %33 = arith.truncf %32 : vector<2x128x128xf32> to vector<2x128x128xbf16>
    %c0_9 = arith.constant 0 : index
    %c0_10 = arith.constant 0 : index
    %c0_11 = arith.constant 0 : index
    %34 = vector.load %arg3[%c0_9, %c0_10, %c0_11] : memref<2x128x128xbf16, #tpu.memory_space<vmem>>, vector<2x128x128xbf16>
    tpu.vector_store %arg3[%c0_9, %c0_10, %c0_11], %33 {strides = array<i32>} : memref<2x128x128xbf16, #tpu.memory_space<vmem>>, vector<2x128x128xbf16>,
    return
  }
  func.func @transform_0(%arg0: i32) -> (i32, i32, i32) {
    %c0_i32 = arith.constant 0 : i32
    %c0_i32_0 = arith.constant 0 : i32
    %c0_i32_1 = arith.constant 0 : i32
    return %arg0, %c0_i32, %c0_i32_0 : i32, i32, i32
  }
  func.func @transform_1(%arg0: i32) -> (i32, i32) {
    %c0_i32 = arith.constant 0 : i32
    %c0_i32_0 = arith.constant 0 : i32
    %c0_i32_1 = arith.constant 0 : i32
    return %c0_i32, %c0_i32_0 : i32, i32
  }
  func.func @transform_2(%arg0: i32) -> (i32, i32, i32) {
    %c0_i32 = arith.constant 0 : i32
    %c0_i32_0 = arith.constant 0 : i32
    %c0_i32_1 = arith.constant 0 : i32
    return %arg0, %c0_i32, %c0_i32_0 : i32, i32, i32
  }
}

</mosaic_0001>

<llo_original>
// kernel: tpu_custom_call.1
$region0: #{tpu_custom_call.1}
  #allocation0 [shape = 'u32[]', space=smem, size = 0x4, offset = 0x4, fixed_abs, tag = 'smem constant byte address 0x4 - core index']
  #allocation1 [shape = 'u32[144,128]{1,0:T(1,128)}', space=vmem, size = 0x12000, scoped, tag = 'internal scratch']
  %s0 = inlined_call_operand.hbm [shape: f32[4,128,384], index: 0, kind: input, shape index: {}]
  %s1 = inlined_call_operand.hbm [shape: bf16[384,384], index: 1, kind: input, shape index: {}]
  %s2 = inlined_call_operand.hbm [shape: bf16[4,128,128], index: 2, kind: output, shape index: {}]
  %s3 = sld [smem:[#allocation0]]
  $region49: #{tpu_custom_call.1} parent=0
    _
  %s5 = ssub.s32 1, %s3
  %s6 = scalar_select 0, %s5, %s3
  $region1: #{tpu_custom_call.1} parent=0
    #allocation2 [shape = 'u8[786432]{0}', space=vmem, size = 0xc0000, scoped, tag = 'input window, operand 0']
    #allocation3 [shape = 's32[2]{0}', space=sflag, size = 0x8, scoped, tag = 'scoped memory for tpu_custom_call.1']
    #allocation4 [shape = 's32[2]{0}', space=sflag, size = 0x8, scoped, tag = 'scoped memory for tpu_custom_call.1']
    #allocation5 [shape = 'u8[294912]{0}', space=vmem, size = 0x48000, scoped, tag = 'input window, operand 1, single buffered']
    #allocation6 [shape = 's32[1]{0}', space=sflag, size = 0x4, scoped, tag = 'scoped memory for tpu_custom_call.1']
    #allocation7 [shape = 'u8[131072]{0}', space=vmem, size = 0x20000, scoped, tag = 'output window, operand 0']
    %7 = vsyncpa [#allocation3], 0
    %s8 = scalar_lea.sflag [#allocation3], 1
    %9 = vsyncpa %s8, 0
    %10 = vsyncpa [#allocation6], 0
    %11 = vsyncpa [#allocation4], 0
    %s12 = scalar_lea.sflag [#allocation4], 1
    %13 = vsyncpa %s12, 0
    loop: start=0, step=1, limit=4
    $region2: #{tpu_custom_call.1} parent=1 // loop_pre_header
      _
    $region3: #{tpu_custom_call.1} parent=1 // loop_header
      %s15 = sphi 0, %s19
      %p16 = scmp.ge.s32.totalorder %s15, 4
      %s25 = sphi 0, %s27
      %s28 = sphi 0, %s25
      %s29 = sphi 0, %s28
      %s45 = sphi 0, %s29
      %s49 = sphi 0, %s49
      %s51 = sphi 0, %s49
      %s52 = sphi 0, %s51
      %s66 = sphi 0, %s52
      %s72 = sphi 0, %s74
      %s75 = sphi 0, %s72
      %s76 = sphi 0, %s75
      %s92 = sphi 0, %s76
    $region4: #{tpu_custom_call.1} parent=1 // loop_header_branch
      %18 = sbr.rel (%p16) target = $region8
    $region5: #{tpu_custom_call.1} parent=1 // loop_body
      %s20 = ssub.s32 %s15, 1
      %s21 = ssub.s32 %s15, 2
      %s22 = sadd.s32 %s15, 1
      %s23 = ssub.s32 %s15, %s22
      %p24 = scmp.eq.s32.totalorder %s23, 0
      %s26 = sadd.s32 %s25, 1
      %s27 = scalar_select %p24, %s25, %s26
      %p30 = pneg %p24
      %p31 = scmp.eq.s32.totalorder %s15, 1
      %p32 = por %p30, %p31
      %p33 = scmp.ne.s32.totalorder %s25, %s28
      %p34 = scmp.eq.s32.totalorder %s15, 0
      %p35 = por %p33, %p34
      %p36 = scmp.ne.s32.totalorder %s25, %s28
      %p37 = scmp.eq.s32.totalorder %s20, 1
      %p38 = por %p36, %p37
      %p39 = scmp.ne.s32.totalorder %s28, %s29
      %p40 = scmp.eq.s32.totalorder %s20, 0
      %p41 = por %p39, %p40
      %p42 = scmp.ne.s32.totalorder %s28, %s29
      %p43 = scmp.eq.s32.totalorder %s21, 1
      %p44 = por %p42, %p43
      %p46 = scmp.ne.s32.totalorder %s29, %s45
      %p47 = scmp.eq.s32.totalorder %s21, 0
      %p48 = por %p46, %p47
      %s50 = sadd.s32 %s49, 1
      %p53 = scmp.eq.s32.totalorder %s15, 1
      %p54 = scmp.ne.s32.totalorder %s49, %s51
      %p55 = scmp.eq.s32.totalorder %s15, 0
      %p56 = por %p54, %p55
      %p57 = scmp.ne.s32.totalorder %s49, %s51
      %p58 = scmp.eq.s32.totalorder %s20, 1
      %p59 = por %p57, %p58
      %p60 = scmp.ne.s32.totalorder %s51, %s52
      %p61 = scmp.eq.s32.totalorder %s20, 0
      %p62 = por %p60, %p61
      %p63 = scmp.ne.s32.totalorder %s51, %s52
      %p64 = scmp.eq.s32.totalorder %s21, 1
      %p65 = por %p63, %p64
      %p67 = scmp.ne.s32.totalorder %s52, %s66
      %p68 = scmp.eq.s32.totalorder %s21, 0
      %p69 = por %p67, %p68
      %s70 = ssub.s32 %s15, %s22
      %p71 = scmp.eq.s32.totalorder %s70, 0
      %s73 = sadd.s32 %s72, 1
      %s74 = scalar_select %p71, %s72, %s73
      %p77 = pneg %p71
      %p78 = scmp.eq.s32.totalorder %s15, 1
      %p79 = por %p77, %p78
      %p80 = scmp.ne.s32.totalorder %s72, %s75
      %p81 = scmp.eq.s32.totalorder %s15, 0
      %p82 = por %p80, %p81
      %p83 = scmp.ne.s32.totalorder %s72, %s75
      %p84 = scmp.eq.s32.totalorder %s20, 1
      %p85 = por %p83, %p84
      %p86 = scmp.ne.s32.totalorder %s75, %s76
      %p87 = scmp.eq.s32.totalorder %s20, 0
      %p88 = por %p86, %p87
      %p89 = scmp.ne.s32.totalorder %s75, %s76
      %p90 = scmp.eq.s32.totalorder %s21, 1
      %p91 = por %p89, %p90
      %p93 = scmp.ne.s32.totalorder %s76, %s92
      %p94 = scmp.eq.s32.totalorder %s21, 0
      %p95 = por %p93, %p94
      %p96 = scmp.le.s32.totalorder 1, %s15
      %p97 = scmp.lt.s32.totalorder %s15, 3
      %p98 = pnand %p96, %p97
      %p99 = pneg %p98
      // Predicated region
      $region9: #{tpu_custom_call.1} parent=5 // pred_check
        _
      $region10: #{tpu_custom_call.1} parent=5 // pred_check_branch
        %101 = sbr.rel (%p98) target = $region12
      $region11: #{tpu_custom_call.1} parent=5 // pred_region
        %s102 = ssub.s32 %s15, 1
        // Predicated region
        $region13: #{tpu_custom_call.1} parent=11 // pred_check
          %p103 = pneg %p62
        $region14: #{tpu_custom_call.1} parent=11 // pred_check_branch
          %105 = sbr.rel (%p103) target = $region16
        $region15: #{tpu_custom_call.1} parent=11 // pred_region
          %s107 = ssub.s32 9216, 9216
          %108 = vsyncadd [#allocation6], %s107
          %s109 = sshll.u32 [#allocation5], 4
          %s110 = int_to_ptr.vmem [resolvable:$true] %s109
          %115 = dma.hbm_to_vmem [thread:$0]  %s1, 9216, %s110, [#allocation6], 192, 192, 12
        $region16: #{tpu_custom_call.1} parent=11 // pred_fallthru
          _
      $region12: #{tpu_custom_call.1} parent=5 // pred_fallthru
        _
      %p116 = scmp.lt.s32.totalorder %s15, 2
      // Predicated region
      $region17: #{tpu_custom_call.1} parent=5 // pred_check
        %p117 = pneg %p116
      $region18: #{tpu_custom_call.1} parent=5 // pred_check_branch
        %119 = sbr.rel (%p117) target = $region20
      $region19: #{tpu_custom_call.1} parent=5 // pred_region
        // Predicated region
        $region21: #{tpu_custom_call.1} parent=19 // pred_check
          %p120 = pneg %p35
        $region22: #{tpu_custom_call.1} parent=19 // pred_check_branch
          %122 = sbr.rel (%p120) target = $region24
        $region23: #{tpu_custom_call.1} parent=19 // pred_region
          %s123 = sand.u32 %s25, 1
          %s124 = scalar_lea.sflag [#allocation3], %s123
          %s125 = sand.u32 %s25, 1
          %s126 = smul.addr %s125, 768
          %s127 = scalar_lea.vmem [#allocation2], %s126
          %s128 = smul.u32 2, %s15
          %s130 = ssub.s32 12288, 12288
          %131 = vsyncadd %s124, %s130
          %s132 = smul.addr %s128, 48
          %s133 = smul.addr %s132, 128
          %s134 = scalar_lea.hbm %s0, %s133
          %s135 = sshll.u32 %s127, 4
          %s136 = int_to_ptr.vmem [resolvable:$true] %s135
          %141 = dma.hbm_to_vmem [thread:$0]  %s134, 12288, %s136, %s124, 384, 384, 24
        $region24: #{tpu_custom_call.1} parent=19 // pred_fallthru
          _
      $region20: #{tpu_custom_call.1} parent=5 // pred_fallthru
        _
      %p142 = scmp.le.s32.totalorder 1, %s15
      %p143 = scmp.lt.s32.totalorder %s15, 3
      %p144 = pnand %p142, %p143
      %p145 = pneg %p144
      // Predicated region
      $region25: #{tpu_custom_call.1} parent=5 // pred_check
        _
      $region26: #{tpu_custom_call.1} parent=5 // pred_check_branch
        %147 = sbr.rel (%p144) target = $region28
      $region27: #{tpu_custom_call.1} parent=5 // pred_region
        %s148 = ssub.s32 %s15, 1
        %s149 = sand.u32 %s28, 1
        %s150 = scalar_lea.sflag [#allocation3], %s149
        %s151 = sand.u32 %s28, 1
        %s152 = smul.addr %s151, 768
        %s153 = scalar_lea.vmem [#allocation2], %s152
        // Predicated region
        $region29: #{tpu_custom_call.1} parent=27 // pred_check
          %p154 = pneg %p41
        $region30: #{tpu_custom_call.1} parent=27 // pred_check_branch
          %156 = sbr.rel (%p154) target = $region32
        $region31: #{tpu_custom_call.1} parent=27 // pred_region
          %157 = dma.done %s150, 12288
        $region32: #{tpu_custom_call.1} parent=27 // pred_fallthru
          _
        // Predicated region
        $region33: #{tpu_custom_call.1} parent=27 // pred_check
          %p158 = pneg %p62
        $region34: #{tpu_custom_call.1} parent=27 // pred_check_branch
          %160 = sbr.rel (%p158) target = $region36
        $region35: #{tpu_custom_call.1} parent=27 // pred_region
          %161 = dma.done [#allocation6], 9216
        $region36: #{tpu_custom_call.1} parent=27 // pred_fallthru
          _
        %s162 = sand.u32 %s28, 1
        %s163 = scalar_lea.sflag [#allocation3], %s162
        %s164 = sand.u32 %s28, 1
        %s165 = smul.addr %s164, 768
        %s166 = scalar_lea.vmem [#allocation2], %s165
        %p167 = pneg %p41
        %p168 = pneg %p38
        %p169 = pneg %p62
        %p170 = pneg %p59
        %p171 = pneg %p88
        %p172 = pneg %p85
        %s173 = sand.u32 %s75, 1
        %s174 = scalar_lea.sflag [#allocation4], %s173
        %s175 = sand.u32 %s75, 1
        %s176 = smul.addr %s175, 128
        %s177 = scalar_lea.vmem [#allocation7], %s176
        %s178 = smul.u32 2, %s20
        %s179 = smul.u32 2, %s20
        %v181 = vld [vmem:[%s153] sm:$0xff]
        %v182 = vld [vmem:[%s153 + $0x8] sm:$0xff]
        %v183 = vld [vmem:[%s153 + $0x10] sm:$0xff]
        %v184 = vld [vmem:[%s153 + $0x18] sm:$0xff]
        %v185 = vld [vmem:[%s153 + $0x20] sm:$0xff]
        %v186 = vld [vmem:[%s153 + $0x28] sm:$0xff]
        %v187 = vld [vmem:[%s153 + $0x30] sm:$0xff]
        %v188 = vld [vmem:[%s153 + $0x38] sm:$0xff]
        %v189 = vld [vmem:[%s153 + $0x40] sm:$0xff]
        %v190 = vld [vmem:[%s153 + $0x48] sm:$0xff]
        %v191 = vld [vmem:[%s153 + $0x50] sm:$0xff]
        %v192 = vld [vmem:[%s153 + $0x58] sm:$0xff]
        %v193 = vld [vmem:[%s153 + $0x60] sm:$0xff]
        %v194 = vld [vmem:[%s153 + $0x68] sm:$0xff]
        %v195 = vld [vmem:[%s153 + $0x70] sm:$0xff]
        %v196 = vld [vmem:[%s153 + $0x78] sm:$0xff]
        %v197 = vld [vmem:[%s153 + $0x80] sm:$0xff]
        %v198 = vld [vmem:[%s153 + $0x88] sm:$0xff]
        %v199 = vld [vmem:[%s153 + $0x90] sm:$0xff]
        %v200 = vld [vmem:[%s153 + $0x98] sm:$0xff]
        %v201 = vld [vmem:[%s153 + $0xa0] sm:$0xff]
        %v202 = vld [vmem:[%s153 + $0xa8] sm:$0xff]
        %v203 = vld [vmem:[%s153 + $0xb0] sm:$0xff]
        %v204 = vld [vmem:[%s153 + $0xb8] sm:$0xff]
        %v205 = vld [vmem:[%s153 + $0xc0] sm:$0xff]
        %v206 = vld [vmem:[%s153 + $0xc8] sm:$0xff]
        %v207 = vld [vmem:[%s153 + $0xd0] sm:$0xff]
        %v208 = vld [vmem:[%s153 + $0xd8] sm:$0xff]
        %v209 = vld [vmem:[%s153 + $0xe0] sm:$0xff]
        %v210 = vld [vmem:[%s153 + $0xe8] sm:$0xff]
        %v211 = vld [vmem:[%s153 + $0xf0] sm:$0xff]
        %v212 = vld [vmem:[%s153 + $0xf8] sm:$0xff]
        %v213 = vld [vmem:[%s153 + $0x100] sm:$0xff]
        %v214 = vld [vmem:[%s153 + $0x108] sm:$0xff]
        %v215 = vld [vmem:[%s153 + $0x110] sm:$0xff]
        %v216 = vld [vmem:[%s153 + $0x118] sm:$0xff]
        %v217 = vld [vmem:[%s153 + $0x120] sm:$0xff]
        %v218 = vld [vmem:[%s153 + $0x128] sm:$0xff]
        %v219 = vld [vmem:[%s153 + $0x130] sm:$0xff]
        %v220 = vld [vmem:[%s153 + $0x138] sm:$0xff]
        %v221 = vld [vmem:[%s153 + $0x140] sm:$0xff]
        %v222 = vld [vmem:[%s153 + $0x148] sm:$0xff]
        %v223 = vld [vmem:[%s153 + $0x150] sm:$0xff]
        %v224 = vld [vmem:[%s153 + $0x158] sm:$0xff]
        %v225 = vld [vmem:[%s153 + $0x160] sm:$0xff]
        %v226 = vld [vmem:[%s153 + $0x168] sm:$0xff]
        %v227 = vld [vmem:[%s153 + $0x170] sm:$0xff]
        %v228 = vld [vmem:[%s153 + $0x178] sm:$0xff]
        %v229 = vld [vmem:[%s153 + $0x180] sm:$0xff]
        %v230 = vld [vmem:[%s153 + $0x188] sm:$0xff]
        %v231 = vld [vmem:[%s153 + $0x190] sm:$0xff]
        %v232 = vld [vmem:[%s153 + $0x198] sm:$0xff]
        %v233 = vld [vmem:[%s153 + $0x1a0] sm:$0xff]
        %v234 = vld [vmem:[%s153 + $0x1a8] sm:$0xff]
        %v235 = vld [vmem:[%s153 + $0x1b0] sm:$0xff]
        %v236 = vld [vmem:[%s153 + $0x1b8] sm:$0xff]
        %v237 = vld [vmem:[%s153 + $0x1c0] sm:$0xff]
        %v238 = vld [vmem:[%s153 + $0x1c8] sm:$0xff]
        %v239 = vld [vmem:[%s153 + $0x1d0] sm:$0xff]
        %v240 = vld [vmem:[%s153 + $0x1d8] sm:$0xff]
        %v241 = vld [vmem:[%s153 + $0x1e0] sm:$0xff]
        %v242 = vld [vmem:[%s153 + $0x1e8] sm:$0xff]
        %v243 = vld [vmem:[%s153 + $0x1f0] sm:$0xff]
        %v244 = vld [vmem:[%s153 + $0x1f8] sm:$0xff]
        %v245 = vld [vmem:[%s153 + $0x200] sm:$0xff]
        %v246 = vld [vmem:[%s153 + $0x208] sm:$0xff]
        %v247 = vld [vmem:[%s153 + $0x210] sm:$0xff]
        %v248 = vld [vmem:[%s153 + $0x218] sm:$0xff]
        %v249 = vld [vmem:[%s153 + $0x220] sm:$0xff]
        %v250 = vld [vmem:[%s153 + $0x228] sm:$0xff]
        %v251 = vld [vmem:[%s153 + $0x230] sm:$0xff]
        %v252 = vld [vmem:[%s153 + $0x238] sm:$0xff]
        %v253 = vld [vmem:[%s153 + $0x240] sm:$0xff]
        %v254 = vld [vmem:[%s153 + $0x248] sm:$0xff]
        %v255 = vld [vmem:[%s153 + $0x250] sm:$0xff]
        %v256 = vld [vmem:[%s153 + $0x258] sm:$0xff]
        %v257 = vld [vmem:[%s153 + $0x260] sm:$0xff]
        %v258 = vld [vmem:[%s153 + $0x268] sm:$0xff]
        %v259 = vld [vmem:[%s153 + $0x270] sm:$0xff]
        %v260 = vld [vmem:[%s153 + $0x278] sm:$0xff]
        %v261 = vld [vmem:[%s153 + $0x280] sm:$0xff]
        %v262 = vld [vmem:[%s153 + $0x288] sm:$0xff]
        %v263 = vld [vmem:[%s153 + $0x290] sm:$0xff]
        %v264 = vld [vmem:[%s153 + $0x298] sm:$0xff]
        %v265 = vld [vmem:[%s153 + $0x2a0] sm:$0xff]
        %v266 = vld [vmem:[%s153 + $0x2a8] sm:$0xff]
        %v267 = vld [vmem:[%s153 + $0x2b0] sm:$0xff]
        %v268 = vld [vmem:[%s153 + $0x2b8] sm:$0xff]
        %v269 = vld [vmem:[%s153 + $0x2c0] sm:$0xff]
        %v270 = vld [vmem:[%s153 + $0x2c8] sm:$0xff]
        %v271 = vld [vmem:[%s153 + $0x2d0] sm:$0xff]
        %v272 = vld [vmem:[%s153 + $0x2d8] sm:$0xff]
        %v273 = vld [vmem:[%s153 + $0x2e0] sm:$0xff]
        %v274 = vld [vmem:[%s153 + $0x2e8] sm:$0xff]
        %v275 = vld [vmem:[%s153 + $0x2f0] sm:$0xff]
        %v276 = vld [vmem:[%s153 + $0x2f8] sm:$0xff]
        %v277 = vpack.c.bf16 %v184, %v181
        %v278 = vpack.c.bf16 %v185, %v182
        %v279 = vpack.c.bf16 %v186, %v183
        %v280 = vpack.c.bf16 %v190, %v187
        %v281 = vpack.c.bf16 %v191, %v188
        %v282 = vpack.c.bf16 %v192, %v189
        %v283 = vpack.c.bf16 %v196, %v193
        %v284 = vpack.c.bf16 %v197, %v194
        %v285 = vpack.c.bf16 %v198, %v195
        %v286 = vpack.c.bf16 %v202, %v199
        %v287 = vpack.c.bf16 %v203, %v200
        %v288 = vpack.c.bf16 %v204, %v201
        %v289 = vpack.c.bf16 %v208, %v205
        %v290 = vpack.c.bf16 %v209, %v206
        %v291 = vpack.c.bf16 %v210, %v207
        %v292 = vpack.c.bf16 %v214, %v211
        %v293 = vpack.c.bf16 %v215, %v212
        %v294 = vpack.c.bf16 %v216, %v213
        %v295 = vpack.c.bf16 %v220, %v217
        %v296 = vpack.c.bf16 %v221, %v218
        %v297 = vpack.c.bf16 %v222, %v219
        %v298 = vpack.c.bf16 %v226, %v223
        %v299 = vpack.c.bf16 %v227, %v224
        %v300 = vpack.c.bf16 %v228, %v225
        %v301 = vpack.c.bf16 %v232, %v229
        %v302 = vpack.c.bf16 %v233, %v230
        %v303 = vpack.c.bf16 %v234, %v231
        %v304 = vpack.c.bf16 %v238, %v235
        %v305 = vpack.c.bf16 %v239, %v236
        %v306 = vpack.c.bf16 %v240, %v237
        %v307 = vpack.c.bf16 %v244, %v241
        %v308 = vpack.c.bf16 %v245, %v242
        %v309 = vpack.c.bf16 %v246, %v243
        %v310 = vpack.c.bf16 %v250, %v247
        %v311 = vpack.c.bf16 %v251, %v248
        %v312 = vpack.c.bf16 %v252, %v249
        %v313 = vpack.c.bf16 %v256, %v253
        %v314 = vpack.c.bf16 %v257, %v254
        %v315 = vpack.c.bf16 %v258, %v255
        %v316 = vpack.c.bf16 %v262, %v259
        %v317 = vpack.c.bf16 %v263, %v260
        %v318 = vpack.c.bf16 %v264, %v261
        %v319 = vpack.c.bf16 %v268, %v265
        %v320 = vpack.c.bf16 %v269, %v266
        %v321 = vpack.c.bf16 %v270, %v267
        %v322 = vpack.c.bf16 %v274, %v271
        %v323 = vpack.c.bf16 %v275, %v272
        %v324 = vpack.c.bf16 %v276, %v273
        %v325 = vld [vmem:[#allocation5] sm:$0xff]
        %v326 = vld [vmem:[#allocation5 + $0x8] sm:$0xf]
        %v327 = vld [vmem:[#allocation5 + $0xc] sm:$0xff]
        %v328 = vld [vmem:[#allocation5 + $0x14] sm:$0xf]
        %v329 = vld [vmem:[#allocation5 + $0x18] sm:$0xff]
        %v330 = vld [vmem:[#allocation5 + $0x20] sm:$0xf]
        %v331 = vld [vmem:[#allocation5 + $0x24] sm:$0xff]
        %v332 = vld [vmem:[#allocation5 + $0x2c] sm:$0xf]
        %v333 = vld [vmem:[#allocation5 + $0x30] sm:$0xff]
        %v334 = vld [vmem:[#allocation5 + $0x38] sm:$0xf]
        %v335 = vld [vmem:[#allocation5 + $0x3c] sm:$0xff]
        %v336 = vld [vmem:[#allocation5 + $0x44] sm:$0xf]
        %v337 = vld [vmem:[#allocation5 + $0x48] sm:$0xff]
        %v338 = vld [vmem:[#allocation5 + $0x50] sm:$0xf]
        %v339 = vld [vmem:[#allocation5 + $0x54] sm:$0xff]
        %v340 = vld [vmem:[#allocation5 + $0x5c] sm:$0xf]
        %v341 = vld [vmem:[#allocation5 + $0x60] sm:$0xff]
        %v342 = vld [vmem:[#allocation5 + $0x68] sm:$0xf]
        %v343 = vld [vmem:[#allocation5 + $0x6c] sm:$0xff]
        %v344 = vld [vmem:[#allocation5 + $0x74] sm:$0xf]
        %v345 = vld [vmem:[#allocation5 + $0x78] sm:$0xff]
        %v346 = vld [vmem:[#allocation5 + $0x80] sm:$0xf]
        %v347 = vld [vmem:[#allocation5 + $0x84] sm:$0xff]
        %v348 = vld [vmem:[#allocation5 + $0x8c] sm:$0xf]
        %v349 = vld [vmem:[#allocation5 + $0x90] sm:$0xff]
        %v350 = vld [vmem:[#allocation5 + $0x98] sm:$0xf]
        %v351 = vld [vmem:[#allocation5 + $0x9c] sm:$0xff]
        %v352 = vld [vmem:[#allocation5 + $0xa4] sm:$0xf]
        %v353 = vld [vmem:[#allocation5 + $0xa8] sm:$0xff]
        %v354 = vld [vmem:[#allocation5 + $0xb0] sm:$0xf]
        %v355 = vld [vmem:[#allocation5 + $0xb4] sm:$0xff]
        %v356 = vld [vmem:[#allocation5 + $0xbc] sm:$0xf]
        %v357 = vld [vmem:[#allocation5 + $0xc0] sm:$0xff]
        %v358 = vld [vmem:[#allocation5 + $0xc8] sm:$0xf]
        %v359 = vld [vmem:[#allocation5 + $0xcc] sm:$0xff]
        %v360 = vld [vmem:[#allocation5 + $0xd4] sm:$0xf]
        %v361 = vld [vmem:[#allocation5 + $0xd8] sm:$0xff]
        %v362 = vld [vmem:[#allocation5 + $0xe0] sm:$0xf]
        %v363 = vld [vmem:[#allocation5 + $0xe4] sm:$0xff]
        %v364 = vld [vmem:[#allocation5 + $0xec] sm:$0xf]
        %v365 = vld [vmem:[#allocation5 + $0xf0] sm:$0xff]
        %v366 = vld [vmem:[#allocation5 + $0xf8] sm:$0xf]
        %v367 = vld [vmem:[#allocation5 + $0xfc] sm:$0xff]
        %v368 = vld [vmem:[#allocation5 + $0x104] sm:$0xf]
        %v369 = vld [vmem:[#allocation5 + $0x108] sm:$0xff]
        %v370 = vld [vmem:[#allocation5 + $0x110] sm:$0xf]
        %v371 = vld [vmem:[#allocation5 + $0x114] sm:$0xff]
        %v372 = vld [vmem:[#allocation5 + $0x11c] sm:$0xf]
        %v373 = vld [vmem:[#allocation5 + $0x120] sm:$0xff]
        %v374 = vld [vmem:[#allocation5 + $0x128] sm:$0xf]
        %v375 = vld [vmem:[#allocation5 + $0x12c] sm:$0xff]
        %v376 = vld [vmem:[#allocation5 + $0x134] sm:$0xf]
        %v377 = vld [vmem:[#allocation5 + $0x138] sm:$0xff]
        %v378 = vld [vmem:[#allocation5 + $0x140] sm:$0xf]
        %v379 = vld [vmem:[#allocation5 + $0x144] sm:$0xff]
        %v380 = vld [vmem:[#allocation5 + $0x14c] sm:$0xf]
        %v381 = vld [vmem:[#allocation5 + $0x150] sm:$0xff]
        %v382 = vld [vmem:[#allocation5 + $0x158] sm:$0xf]
        %v383 = vld [vmem:[#allocation5 + $0x15c] sm:$0xff]
        %v384 = vld [vmem:[#allocation5 + $0x164] sm:$0xf]
        %v385 = vld [vmem:[#allocation5 + $0x168] sm:$0xff]
        %v386 = vld [vmem:[#allocation5 + $0x170] sm:$0xf]
        %v387 = vld [vmem:[#allocation5 + $0x174] sm:$0xff]
        %v388 = vld [vmem:[#allocation5 + $0x17c] sm:$0xf]
        %v389 = vld [vmem:[#allocation5 + $0x180] sm:$0xff]
        %v390 = vld [vmem:[#allocation5 + $0x188] sm:$0xf]
        %v391 = vld [vmem:[#allocation5 + $0x18c] sm:$0xff]
        %v392 = vld [vmem:[#allocation5 + $0x194] sm:$0xf]
        %v393 = vld [vmem:[#allocation5 + $0x198] sm:$0xff]
        %v394 = vld [vmem:[#allocation5 + $0x1a0] sm:$0xf]
        %v395 = vld [vmem:[#allocation5 + $0x1a4] sm:$0xff]
        %v396 = vld [vmem:[#allocation5 + $0x1ac] sm:$0xf]
        %v397 = vld [vmem:[#allocation5 + $0x1b0] sm:$0xff]
        %v398 = vld [vmem:[#allocation5 + $0x1b8] sm:$0xf]
        %v399 = vld [vmem:[#allocation5 + $0x1bc] sm:$0xff]
        %v400 = vld [vmem:[#allocation5 + $0x1c4] sm:$0xf]
        %v401 = vld [vmem:[#allocation5 + $0x1c8] sm:$0xff]
        %v402 = vld [vmem:[#allocation5 + $0x1d0] sm:$0xf]
        %v403 = vld [vmem:[#allocation5 + $0x1d4] sm:$0xff]
        %v404 = vld [vmem:[#allocation5 + $0x1dc] sm:$0xf]
        %v405 = vld [vmem:[#allocation5 + $0x1e0] sm:$0xff]
        %v406 = vld [vmem:[#allocation5 + $0x1e8] sm:$0xf]
        %v407 = vld [vmem:[#allocation5 + $0x1ec] sm:$0xff]
        %v408 = vld [vmem:[#allocation5 + $0x1f4] sm:$0xf]
        %v409 = vld [vmem:[#allocation5 + $0x1f8] sm:$0xff]
        %v410 = vld [vmem:[#allocation5 + $0x200] sm:$0xf]
        %v411 = vld [vmem:[#allocation5 + $0x204] sm:$0xff]
        %v412 = vld [vmem:[#allocation5 + $0x20c] sm:$0xf]
        %v413 = vld [vmem:[#allocation5 + $0x210] sm:$0xff]
        %v414 = vld [vmem:[#allocation5 + $0x218] sm:$0xf]
        %v415 = vld [vmem:[#allocation5 + $0x21c] sm:$0xff]
        %v416 = vld [vmem:[#allocation5 + $0x224] sm:$0xf]
        %v417 = vld [vmem:[#allocation5 + $0x228] sm:$0xff]
        %v418 = vld [vmem:[#allocation5 + $0x230] sm:$0xf]
        %v419 = vld [vmem:[#allocation5 + $0x234] sm:$0xff]
        %v420 = vld [vmem:[#allocation5 + $0x23c] sm:$0xf]
        %v517 = vunpack.c.l.b16 %v325
        %v518 = vunpack.c.h.b16 %v325
        %v519 = vunpack.c.l.b16 %v326
        %v520 = vunpack.c.l.b16 %v327
        %v521 = vunpack.c.h.b16 %v327
        %v522 = vunpack.c.l.b16 %v328
        %v523 = vunpack.c.l.b16 %v329
        %v524 = vunpack.c.h.b16 %v329
        %v525 = vunpack.c.l.b16 %v330
        %v526 = vunpack.c.l.b16 %v331
        %v527 = vunpack.c.h.b16 %v331
        %v528 = vunpack.c.l.b16 %v332
        %v529 = vunpack.c.l.b16 %v333
        %v530 = vunpack.c.h.b16 %v333
        %v531 = vunpack.c.l.b16 %v334
        %v532 = vunpack.c.l.b16 %v335
        %v533 = vunpack.c.h.b16 %v335
        %v534 = vunpack.c.l.b16 %v336
        %v535 = vunpack.c.l.b16 %v337
        %v536 = vunpack.c.h.b16 %v337
        %v537 = vunpack.c.l.b16 %v338
        %v538 = vunpack.c.l.b16 %v339
        %v539 = vunpack.c.h.b16 %v339
        %v540 = vunpack.c.l.b16 %v340
        %v541 = vunpack.c.l.b16 %v341
        %v542 = vunpack.c.h.b16 %v341
        %v543 = vunpack.c.l.b16 %v342
        %v544 = vunpack.c.l.b16 %v343
        %v545 = vunpack.c.h.b16 %v343
        %v546 = vunpack.c.l.b16 %v344
        %v547 = vunpack.c.l.b16 %v345
        %v548 = vunpack.c.h.b16 %v345
        %v549 = vunpack.c.l.b16 %v346
        %v550 = vunpack.c.l.b16 %v347
        %v551 = vunpack.c.h.b16 %v347
        %v552 = vunpack.c.l.b16 %v348
        %v553 = vunpack.c.l.b16 %v349
        %v554 = vunpack.c.h.b16 %v349
        %v555 = vunpack.c.l.b16 %v350
        %v556 = vunpack.c.l.b16 %v351
        %v557 = vunpack.c.h.b16 %v351
        %v558 = vunpack.c.l.b16 %v352
        %v559 = vunpack.c.l.b16 %v353
        %v560 = vunpack.c.h.b16 %v353
        %v561 = vunpack.c.l.b16 %v354
        %v562 = vunpack.c.l.b16 %v355
        %v563 = vunpack.c.h.b16 %v355
        %v564 = vunpack.c.l.b16 %v356
        %v565 = vunpack.c.l.b16 %v357
        %v566 = vunpack.c.h.b16 %v357
        %v567 = vunpack.c.l.b16 %v358
        %v568 = vunpack.c.l.b16 %v359
        %v569 = vunpack.c.h.b16 %v359
        %v570 = vunpack.c.l.b16 %v360
        %v571 = vunpack.c.l.b16 %v361
        %v572 = vunpack.c.h.b16 %v361
        %v573 = vunpack.c.l.b16 %v362
        %v574 = vunpack.c.l.b16 %v363
        %v575 = vunpack.c.h.b16 %v363
        %v576 = vunpack.c.l.b16 %v364
        %v577 = vunpack.c.l.b16 %v365
        %v578 = vunpack.c.h.b16 %v365
        %v579 = vunpack.c.l.b16 %v366
        %v580 = vunpack.c.l.b16 %v367
        %v581 = vunpack.c.h.b16 %v367
        %v582 = vunpack.c.l.b16 %v368
        %v583 = vunpack.c.l.b16 %v369
        %v584 = vunpack.c.h.b16 %v369
        %v585 = vunpack.c.l.b16 %v370
        %v586 = vunpack.c.l.b16 %v371
        %v587 = vunpack.c.h.b16 %v371
        %v588 = vunpack.c.l.b16 %v372
        %v589 = vunpack.c.l.b16 %v373
        %v590 = vunpack.c.h.b16 %v373
        %v591 = vunpack.c.l.b16 %v374
        %v592 = vunpack.c.l.b16 %v375
        %v593 = vunpack.c.h.b16 %v375
        %v594 = vunpack.c.l.b16 %v376
        %v595 = vunpack.c.l.b16 %v377
        %v596 = vunpack.c.h.b16 %v377
        %v597 = vunpack.c.l.b16 %v378
        %v598 = vunpack.c.l.b16 %v379
        %v599 = vunpack.c.h.b16 %v379
        %v600 = vunpack.c.l.b16 %v380
        %v601 = vunpack.c.l.b16 %v381
        %v602 = vunpack.c.h.b16 %v381
        %v603 = vunpack.c.l.b16 %v382
        %v604 = vunpack.c.l.b16 %v383
        %v605 = vunpack.c.h.b16 %v383
        %v606 = vunpack.c.l.b16 %v384
        %v607 = vunpack.c.l.b16 %v385
        %v608 = vunpack.c.h.b16 %v385
        %v609 = vunpack.c.l.b16 %v386
        %v610 = vunpack.c.l.b16 %v387
        %v611 = vunpack.c.h.b16 %v387
        %v612 = vunpack.c.l.b16 %v388
        %v613 = vunpack.c.l.b16 %v389
        %v614 = vunpack.c.h.b16 %v389
        %v615 = vunpack.c.l.b16 %v390
        %v616 = vunpack.c.l.b16 %v391
        %v617 = vunpack.c.h.b16 %v391
        %v618 = vunpack.c.l.b16 %v392
        %v619 = vunpack.c.l.b16 %v393
        %v620 = vunpack.c.h.b16 %v393
        %v621 = vunpack.c.l.b16 %v394
        %v622 = vunpack.c.l.b16 %v395
        %v623 = vunpack.c.h.b16 %v395
        %v624 = vunpack.c.l.b16 %v396
        %v625 = vunpack.c.l.b16 %v397
        %v626 = vunpack.c.h.b16 %v397
        %v627 = vunpack.c.l.b16 %v398
        %v628 = vunpack.c.l.b16 %v399
        %v629 = vunpack.c.h.b16 %v399
        %v630 = vunpack.c.l.b16 %v400
        %v631 = vunpack.c.l.b16 %v401
        %v632 = vunpack.c.h.b16 %v401
        %v633 = vunpack.c.l.b16 %v402
        %v634 = vunpack.c.l.b16 %v403
        %v635 = vunpack.c.h.b16 %v403
        %v636 = vunpack.c.l.b16 %v404
        %v637 = vunpack.c.l.b16 %v405
        %v638 = vunpack.c.h.b16 %v405
        %v639 = vunpack.c.l.b16 %v406
        %v640 = vunpack.c.l.b16 %v407
        %v641 = vunpack.c.h.b16 %v407
        %v642 = vunpack.c.l.b16 %v408
        %v643 = vunpack.c.l.b16 %v409
        %v644 = vunpack.c.h.b16 %v409
        %v645 = vunpack.c.l.b16 %v410
        %v646 = vunpack.c.l.b16 %v411
        %v647 = vunpack.c.h.b16 %v411
        %v648 = vunpack.c.l.b16 %v412
        %v649 = vunpack.c.l.b16 %v413
        %v650 = vunpack.c.h.b16 %v413
        %v651 = vunpack.c.l.b16 %v414
        %v652 = vunpack.c.l.b16 %v415
        %v653 = vunpack.c.h.b16 %v415
        %v654 = vunpack.c.l.b16 %v416
        %v655 = vunpack.c.l.b16 %v417
        %v656 = vunpack.c.h.b16 %v417
        %v657 = vunpack.c.l.b16 %v418
        %v658 = vunpack.c.l.b16 %v419
        %v659 = vunpack.c.h.b16 %v419
        %v660 = vunpack.c.l.b16 %v420
        %v661 = vpack.c.b16 %v520, %v517
        %v662 = vpack.c.b16 %v521, %v518
        %v663 = vpack.c.b16 %v522, %v519
        %v664 = vpack.c.b16 %v526, %v523
        %v665 = vpack.c.b16 %v527, %v524
        %v666 = vpack.c.b16 %v528, %v525
        %v667 = vpack.c.b16 %v532, %v529
        %v668 = vpack.c.b16 %v533, %v530
        %v669 = vpack.c.b16 %v534, %v531
        %v670 = vpack.c.b16 %v538, %v535
        %v671 = vpack.c.b16 %v539, %v536
        %v672 = vpack.c.b16 %v540, %v537
        %v673 = vpack.c.b16 %v544, %v541
        %v674 = vpack.c.b16 %v545, %v542
        %v675 = vpack.c.b16 %v546, %v543
        %v676 = vpack.c.b16 %v550, %v547
        %v677 = vpack.c.b16 %v551, %v548
        %v678 = vpack.c.b16 %v552, %v549
        %v679 = vpack.c.b16 %v556, %v553
        %v680 = vpack.c.b16 %v557, %v554
        %v681 = vpack.c.b16 %v558, %v555
        %v682 = vpack.c.b16 %v562, %v559
        %v683 = vpack.c.b16 %v563, %v560
        %v684 = vpack.c.b16 %v564, %v561
        %v685 = vpack.c.b16 %v568, %v565
        %v686 = vpack.c.b16 %v569, %v566
        %v687 = vpack.c.b16 %v570, %v567
        %v688 = vpack.c.b16 %v574, %v571
        %v689 = vpack.c.b16 %v575, %v572
        %v690 = vpack.c.b16 %v576, %v573
        %v691 = vpack.c.b16 %v580, %v577
        %v692 = vpack.c.b16 %v581, %v578
        %v693 = vpack.c.b16 %v582, %v579
        %v694 = vpack.c.b16 %v586, %v583
        %v695 = vpack.c.b16 %v587, %v584
        %v696 = vpack.c.b16 %v588, %v585
        %v697 = vpack.c.b16 %v592, %v589
        %v698 = vpack.c.b16 %v593, %v590
        %v699 = vpack.c.b16 %v594, %v591
        %v700 = vpack.c.b16 %v598, %v595
        %v701 = vpack.c.b16 %v599, %v596
        %v702 = vpack.c.b16 %v600, %v597
        %v703 = vpack.c.b16 %v604, %v601
        %v704 = vpack.c.b16 %v605, %v602
        %v705 = vpack.c.b16 %v606, %v603
        %v706 = vpack.c.b16 %v610, %v607
        %v707 = vpack.c.b16 %v611, %v608
        %v708 = vpack.c.b16 %v612, %v609
        %v709 = vpack.c.b16 %v616, %v613
        %v710 = vpack.c.b16 %v617, %v614
        %v711 = vpack.c.b16 %v618, %v615
        %v712 = vpack.c.b16 %v622, %v619
        %v713 = vpack.c.b16 %v623, %v620
        %v714 = vpack.c.b16 %v624, %v621
        %v715 = vpack.c.b16 %v628, %v625
        %v716 = vpack.c.b16 %v629, %v626
        %v717 = vpack.c.b16 %v630, %v627
        %v718 = vpack.c.b16 %v634, %v631
        %v719 = vpack.c.b16 %v635, %v632
        %v720 = vpack.c.b16 %v636, %v633
        %v721 = vpack.c.b16 %v640, %v637
        %v722 = vpack.c.b16 %v641, %v638
        %v723 = vpack.c.b16 %v642, %v639
        %v724 = vpack.c.b16 %v646, %v643
        %v725 = vpack.c.b16 %v647, %v644
        %v726 = vpack.c.b16 %v648, %v645
        %v727 = vpack.c.b16 %v652, %v649
        %v728 = vpack.c.b16 %v653, %v650
        %v729 = vpack.c.b16 %v654, %v651
        %v730 = vpack.c.b16 %v658, %v655
        %v731 = vpack.c.b16 %v659, %v656
        %v732 = vpack.c.b16 %v660, %v657
        %805 = vmatprep.subr.bf16.mxu0 %v683
        %806 = vmatpush1.bf16.msra.mxu0 %v682
        %807 = vmatprep.subr.bf16.mxu0 %v680
        %808 = vmatpush1.bf16.msra.mxu0 %v679
        %809 = vmatprep.subr.bf16.mxu0 %v677
        %810 = vmatpush1.bf16.msra.mxu0 %v676
        %811 = vmatprep.subr.bf16.mxu0 %v674
        %812 = vmatpush1.bf16.msra.mxu0 %v673
        %813 = vmatprep.subr.bf16.mxu0 %v671
        %814 = vmatpush1.bf16.msra.mxu0 %v670
        %815 = vmatprep.subr.bf16.mxu0 %v668
        %816 = vmatpush1.bf16.msra.mxu0 %v667
        %817 = vmatprep.subr.bf16.mxu0 %v665
        %818 = vmatpush1.bf16.msra.mxu0 %v664
        %819 = vmatprep.subr.bf16.mxu0 %v662
        %820 = vmatpush1.bf16.msra.mxu0 %v661
        %821 = vmatprep.subr.bf16.mxu0 %v707
        %822 = vmatpush2.bf16.msra.mxu0 %v706
        %823 = vmatprep.subr.bf16.mxu0 %v704
        %824 = vmatpush2.bf16.msra.mxu0 %v703
        %825 = vmatprep.subr.bf16.mxu0 %v701
        %826 = vmatpush2.bf16.msra.mxu0 %v700
        %827 = vmatprep.subr.bf16.mxu0 %v698
        %828 = vmatpush2.bf16.msra.mxu0 %v697
        %829 = vmatprep.subr.bf16.mxu0 %v695
        %830 = vmatpush2.bf16.msra.mxu0 %v694
        %831 = vmatprep.subr.bf16.mxu0 %v692
        %832 = vmatpush2.bf16.msra.mxu0 %v691
        %833 = vmatprep.subr.bf16.mxu0 %v689
        %834 = vmatpush2.bf16.msra.mxu0 %v688
        %835 = vmatprep.subr.bf16.mxu0 %v686
        %836 = vmatpush2.bf16.msra.mxu0 %v685
        %837 = vmatprep.mubr.bf16.mxu0 %v278
        %838 = vmatmul.mubr.bf16.gmra.mxu0 %v277
        %v839 = vpop.f32.mrf.mxu0
        %v840 = vadd.f32 0.0, %v839
        %v841 = vpop.f32.mrf.mxu0
        %v842 = vadd.f32 0.0, %v841
        %v843 = vpop.f32.mrf.mxu0
        %v844 = vadd.f32 0.0, %v843
        %v845 = vpop.f32.mrf.mxu0
        %v846 = vadd.f32 0.0, %v845
        %847 = vmatprep.mubr.bf16.mxu0 %v281
        %848 = vmatmul.mubr.bf16.gmra.mxu0 %v280
        %v849 = vpop.f32.mrf.mxu0
        %v850 = vadd.f32 0.0, %v849
        %v851 = vpop.f32.mrf.mxu0
        %v852 = vadd.f32 0.0, %v851
        %v853 = vpop.f32.mrf.mxu0
        %v854 = vadd.f32 0.0, %v853
        %v855 = vpop.f32.mrf.mxu0
        %v856 = vadd.f32 0.0, %v855
        %857 = vmatprep.mubr.bf16.mxu0 %v284
        %858 = vmatmul.mubr.bf16.gmra.mxu0 %v283
        %v859 = vpop.f32.mrf.mxu0
        %v860 = vadd.f32 0.0, %v859
        %v861 = vpop.f32.mrf.mxu0
        %v862 = vadd.f32 0.0, %v861
        %v863 = vpop.f32.mrf.mxu0
        %v864 = vadd.f32 0.0, %v863
        %v865 = vpop.f32.mrf.mxu0
        %v866 = vadd.f32 0.0, %v865
        %867 = vmatprep.mubr.bf16.mxu0 %v287
        %868 = vmatmul.mubr.bf16.gmra.mxu0 %v286
        %v869 = vpop.f32.mrf.mxu0
        %v870 = vadd.f32 0.0, %v869
        %v871 = vpop.f32.mrf.mxu0
        %v872 = vadd.f32 0.0, %v871
        %v873 = vpop.f32.mrf.mxu0
        %v874 = vadd.f32 0.0, %v873
        %v875 = vpop.f32.mrf.mxu0
        %v876 = vadd.f32 0.0, %v875
        %877 = vmatprep.mubr.bf16.mxu0 %v290
        %878 = vmatmul.mubr.bf16.gmra.mxu0 %v289
        %v879 = vpop.f32.mrf.mxu0
        %v880 = vadd.f32 0.0, %v879
        %v881 = vpop.f32.mrf.mxu0
        %v882 = vadd.f32 0.0, %v881
        %v883 = vpop.f32.mrf.mxu0
        %v884 = vadd.f32 0.0, %v883
        %v885 = vpop.f32.mrf.mxu0
        %v886 = vadd.f32 0.0, %v885
        %887 = vmatprep.mubr.bf16.mxu0 %v293
        %888 = vmatmul.mubr.bf16.gmra.mxu0 %v292
        %v889 = vpop.f32.mrf.mxu0
        %v890 = vadd.f32 0.0, %v889
        %v891 = vpop.f32.mrf.mxu0
        %v892 = vadd.f32 0.0, %v891
        %v893 = vpop.f32.mrf.mxu0
        %v894 = vadd.f32 0.0, %v893
        %v895 = vpop.f32.mrf.mxu0
        %v896 = vadd.f32 0.0, %v895
        %897 = vmatprep.mubr.bf16.mxu0 %v296
        %898 = vmatmul.mubr.bf16.gmra.mxu0 %v295
        %v899 = vpop.f32.mrf.mxu0
        %v900 = vadd.f32 0.0, %v899
        %v901 = vpop.f32.mrf.mxu0
        %v902 = vadd.f32 0.0, %v901
        %v903 = vpop.f32.mrf.mxu0
        %v904 = vadd.f32 0.0, %v903
        %v905 = vpop.f32.mrf.mxu0
        %v906 = vadd.f32 0.0, %v905
        %907 = vmatprep.mubr.bf16.mxu0 %v299
        %908 = vmatmul.mubr.bf16.gmra.mxu0 %v298
        %v909 = vpop.f32.mrf.mxu0
        %v910 = vadd.f32 0.0, %v909
        %v911 = vpop.f32.mrf.mxu0
        %v912 = vadd.f32 0.0, %v911
        %v913 = vpop.f32.mrf.mxu0
        %v914 = vadd.f32 0.0, %v913
        %v915 = vpop.f32.mrf.mxu0
        %v916 = vadd.f32 0.0, %v915
        %917 = vmatprep.mubr.bf16.mxu0 %v302
        %918 = vmatmul.mubr.bf16.gmra.mxu0 %v301
        %v919 = vpop.f32.mrf.mxu0
        %v920 = vadd.f32 0.0, %v919
        %v921 = vpop.f32.mrf.mxu0
        %v922 = vadd.f32 0.0, %v921
        %v923 = vpop.f32.mrf.mxu0
        %v924 = vadd.f32 0.0, %v923
        %v925 = vpop.f32.mrf.mxu0
        %v926 = vadd.f32 0.0, %v925
        %927 = vmatprep.mubr.bf16.mxu0 %v305
        %928 = vmatmul.mubr.bf16.gmra.mxu0 %v304
        %v929 = vpop.f32.mrf.mxu0
        %v930 = vadd.f32 0.0, %v929
        %v931 = vpop.f32.mrf.mxu0
        %v932 = vadd.f32 0.0, %v931
        %v933 = vpop.f32.mrf.mxu0
        %v934 = vadd.f32 0.0, %v933
        %v935 = vpop.f32.mrf.mxu0
        %v936 = vadd.f32 0.0, %v935
        %937 = vmatprep.mubr.bf16.mxu0 %v308
        %938 = vmatmul.mubr.bf16.gmra.mxu0 %v307
        %v939 = vpop.f32.mrf.mxu0
        %v940 = vadd.f32 0.0, %v939
        %v941 = vpop.f32.mrf.mxu0
        %v942 = vadd.f32 0.0, %v941
        %v943 = vpop.f32.mrf.mxu0
        %v944 = vadd.f32 0.0, %v943
        %v945 = vpop.f32.mrf.mxu0
        %v946 = vadd.f32 0.0, %v945
        %947 = vmatprep.mubr.bf16.mxu0 %v311
        %948 = vmatmul.mubr.bf16.gmra.mxu0 %v310
        %v949 = vpop.f32.mrf.mxu0
        %v950 = vadd.f32 0.0, %v949
        %v951 = vpop.f32.mrf.mxu0
        %v952 = vadd.f32 0.0, %v951
        %v953 = vpop.f32.mrf.mxu0
        %v954 = vadd.f32 0.0, %v953
        %v955 = vpop.f32.mrf.mxu0
        %v956 = vadd.f32 0.0, %v955
        %957 = vmatprep.mubr.bf16.mxu0 %v314
        %958 = vmatmul.mubr.bf16.gmra.mxu0 %v313
        %v959 = vpop.f32.mrf.mxu0
        %v960 = vadd.f32 0.0, %v959
        %v961 = vpop.f32.mrf.mxu0
        %v962 = vadd.f32 0.0, %v961
        %v963 = vpop.f32.mrf.mxu0
        %v964 = vadd.f32 0.0, %v963
        %v965 = vpop.f32.mrf.mxu0
        %v966 = vadd.f32 0.0, %v965
        %967 = vmatprep.mubr.bf16.mxu0 %v317
        %968 = vmatmul.mubr.bf16.gmra.mxu0 %v316
        %v969 = vpop.f32.mrf.mxu0
        %v970 = vadd.f32 0.0, %v969
        %v971 = vpop.f32.mrf.mxu0
        %v972 = vadd.f32 0.0, %v971
        %v973 = vpop.f32.mrf.mxu0
        %v974 = vadd.f32 0.0, %v973
        %v975 = vpop.f32.mrf.mxu0
        %v976 = vadd.f32 0.0, %v975
        %977 = vmatprep.mubr.bf16.mxu0 %v320
        %978 = vmatmul.mubr.bf16.gmra.mxu0 %v319
        %v979 = vpop.f32.mrf.mxu0
        %v980 = vadd.f32 0.0, %v979
        %v981 = vpop.f32.mrf.mxu0
        %v982 = vadd.f32 0.0, %v981
        %v983 = vpop.f32.mrf.mxu0
        %v984 = vadd.f32 0.0, %v983
        %v985 = vpop.f32.mrf.mxu0
        %v986 = vadd.f32 0.0, %v985
        %987 = vmatprep.mubr.bf16.mxu0 %v323
        %988 = vmatmul.mubr.bf16.gmra.mxu0 %v322
        %v989 = vpop.f32.mrf.mxu0
        %v990 = vadd.f32 0.0, %v989
        %v991 = vpop.f32.mrf.mxu0
        %v992 = vadd.f32 0.0, %v991
        %v993 = vpop.f32.mrf.mxu0
        %v994 = vadd.f32 0.0, %v993
        %v995 = vpop.f32.mrf.mxu0
        %v996 = vadd.f32 0.0, %v995
        %997 = vdwg.mxu0
        %998 = vmatprep.subr.bf16.mxu0 %v731
        %999 = vmatpush1.bf16.msra.mxu0 %v730
        %1000 = vmatprep.subr.bf16.mxu0 %v728
        %1001 = vmatpush1.bf16.msra.mxu0 %v727
        %1002 = vmatprep.subr.bf16.mxu0 %v725
        %1003 = vmatpush1.bf16.msra.mxu0 %v724
        %1004 = vmatprep.subr.bf16.mxu0 %v722
        %1005 = vmatpush1.bf16.msra.mxu0 %v721
        %1006 = vmatprep.subr.bf16.mxu0 %v719
        %1007 = vmatpush1.bf16.msra.mxu0 %v718
        %1008 = vmatprep.subr.bf16.mxu0 %v716
        %1009 = vmatpush1.bf16.msra.mxu0 %v715
        %1010 = vmatprep.subr.bf16.mxu0 %v713
        %1011 = vmatpush1.bf16.msra.mxu0 %v712
        %1012 = vmatprep.subr.bf16.mxu0 %v710
        %1013 = vmatpush1.bf16.msra.mxu0 %v709
        %1014 = vmatprep.subr.bf16.mxu0 0
        %1015 = vmatpush2.bf16.msra.mxu0 0
        %1016 = vmatprep.subr.bf16.mxu0 0
        %1017 = vmatpush2.bf16.msra.mxu0 0
        %1018 = vmatprep.subr.bf16.mxu0 0
        %1019 = vmatpush2.bf16.msra.mxu0 0
        %1020 = vmatprep.subr.bf16.mxu0 0
        %1021 = vmatpush2.bf16.msra.mxu0 0
        %1022 = vmatprep.subr.bf16.mxu0 0
        %1023 = vmatpush2.bf16.msra.mxu0 0
        %1024 = vmatprep.subr.bf16.mxu0 0
        %1025 = vmatpush2.bf16.msra.mxu0 0
        %1026 = vmatprep.subr.bf16.mxu0 0
        %1027 = vmatpush2.bf16.msra.mxu0 0
        %1028 = vmatprep.subr.bf16.mxu0 0
        %1029 = vmatpush2.bf16.msra.mxu0 0
        %1030 = vmatprep.mubr.bf16.mxu0 0
        %1031 = vmatmul.mubr.bf16.gmra.mxu0 %v279
        %v1032 = vpop.f32.mrf.mxu0
        %v1033 = vadd.f32 %v840, %v1032
        %v1034 = vpop.f32.mrf.mxu0
        %v1035 = vadd.f32 %v842, %v1034
        %v1036 = vpop.f32.mrf.mxu0
        %v1037 = vadd.f32 %v844, %v1036
        %v1038 = vpop.f32.mrf.mxu0
        %v1039 = vadd.f32 %v846, %v1038
        %1040 = vmatprep.mubr.bf16.mxu0 0
        %1041 = vmatmul.mubr.bf16.gmra.mxu0 %v282
        %v1042 = vpop.f32.mrf.mxu0
        %v1043 = vadd.f32 %v850, %v1042
        %v1044 = vpop.f32.mrf.mxu0
        %v1045 = vadd.f32 %v852, %v1044
        %v1046 = vpop.f32.mrf.mxu0
        %v1047 = vadd.f32 %v854, %v1046
        %v1048 = vpop.f32.mrf.mxu0
        %v1049 = vadd.f32 %v856, %v1048
        %1050 = vmatprep.mubr.bf16.mxu0 0
        %1051 = vmatmul.mubr.bf16.gmra.mxu0 %v285
        %v1052 = vpop.f32.mrf.mxu0
        %v1053 = vadd.f32 %v860, %v1052
        %v1054 = vpop.f32.mrf.mxu0
        %v1055 = vadd.f32 %v862, %v1054
        %v1056 = vpop.f32.mrf.mxu0
        %v1057 = vadd.f32 %v864, %v1056
        %v1058 = vpop.f32.mrf.mxu0
        %v1059 = vadd.f32 %v866, %v1058
        %1060 = vmatprep.mubr.bf16.mxu0 0
        %1061 = vmatmul.mubr.bf16.gmra.mxu0 %v288
        %v1062 = vpop.f32.mrf.mxu0
        %v1063 = vadd.f32 %v870, %v1062
        %v1064 = vpop.f32.mrf.mxu0
        %v1065 = vadd.f32 %v872, %v1064
        %v1066 = vpop.f32.mrf.mxu0
        %v1067 = vadd.f32 %v874, %v1066
        %v1068 = vpop.f32.mrf.mxu0
        %v1069 = vadd.f32 %v876, %v1068
        %1070 = vmatprep.mubr.bf16.mxu0 0
        %1071 = vmatmul.mubr.bf16.gmra.mxu0 %v291
        %v1072 = vpop.f32.mrf.mxu0
        %v1073 = vadd.f32 %v880, %v1072
        %v1074 = vpop.f32.mrf.mxu0
        %v1075 = vadd.f32 %v882, %v1074
        %v1076 = vpop.f32.mrf.mxu0
        %v1077 = vadd.f32 %v884, %v1076
        %v1078 = vpop.f32.mrf.mxu0
        %v1079 = vadd.f32 %v886, %v1078
        %1080 = vmatprep.mubr.bf16.mxu0 0
        %1081 = vmatmul.mubr.bf16.gmra.mxu0 %v294
        %v1082 = vpop.f32.mrf.mxu0
        %v1083 = vadd.f32 %v890, %v1082
        %v1084 = vpop.f32.mrf.mxu0
        %v1085 = vadd.f32 %v892, %v1084
        %v1086 = vpop.f32.mrf.mxu0
        %v1087 = vadd.f32 %v894, %v1086
        %v1088 = vpop.f32.mrf.mxu0
        %v1089 = vadd.f32 %v896, %v1088
        %1090 = vmatprep.mubr.bf16.mxu0 0
        %1091 = vmatmul.mubr.bf16.gmra.mxu0 %v297
        %v1092 = vpop.f32.mrf.mxu0
        %v1093 = vadd.f32 %v900, %v1092
        %v1094 = vpop.f32.mrf.mxu0
        %v1095 = vadd.f32 %v902, %v1094
        %v1096 = vpop.f32.mrf.mxu0
        %v1097 = vadd.f32 %v904, %v1096
        %v1098 = vpop.f32.mrf.mxu0
        %v1099 = vadd.f32 %v906, %v1098
        %1100 = vmatprep.mubr.bf16.mxu0 0
        %1101 = vmatmul.mubr.bf16.gmra.mxu0 %v300
        %v1102 = vpop.f32.mrf.mxu0
        %v1103 = vadd.f32 %v910, %v1102
        %v1104 = vpop.f32.mrf.mxu0
        %v1105 = vadd.f32 %v912, %v1104
        %v1106 = vpop.f32.mrf.mxu0
        %v1107 = vadd.f32 %v914, %v1106
        %v1108 = vpop.f32.mrf.mxu0
        %v1109 = vadd.f32 %v916, %v1108
        %1110 = vmatprep.mubr.bf16.mxu0 0
        %1111 = vmatmul.mubr.bf16.gmra.mxu0 %v303
        %v1112 = vpop.f32.mrf.mxu0
        %v1113 = vadd.f32 %v920, %v1112
        %v1114 = vpop.f32.mrf.mxu0
        %v1115 = vadd.f32 %v922, %v1114
        %v1116 = vpop.f32.mrf.mxu0
        %v1117 = vadd.f32 %v924, %v1116
        %v1118 = vpop.f32.mrf.mxu0
        %v1119 = vadd.f32 %v926, %v1118
        %1120 = vmatprep.mubr.bf16.mxu0 0
        %1121 = vmatmul.mubr.bf16.gmra.mxu0 %v306
        %v1122 = vpop.f32.mrf.mxu0
        %v1123 = vadd.f32 %v930, %v1122
        %v1124 = vpop.f32.mrf.mxu0
        %v1125 = vadd.f32 %v932, %v1124
        %v1126 = vpop.f32.mrf.mxu0
        %v1127 = vadd.f32 %v934, %v1126
        %v1128 = vpop.f32.mrf.mxu0
        %v1129 = vadd.f32 %v936, %v1128
        %1130 = vmatprep.mubr.bf16.mxu0 0
        %1131 = vmatmul.mubr.bf16.gmra.mxu0 %v309
        %v1132 = vpop.f32.mrf.mxu0
        %v1133 = vadd.f32 %v940, %v1132
        %v1134 = vpop.f32.mrf.mxu0
        %v1135 = vadd.f32 %v942, %v1134
        %v1136 = vpop.f32.mrf.mxu0
        %v1137 = vadd.f32 %v944, %v1136
        %v1138 = vpop.f32.mrf.mxu0
        %v1139 = vadd.f32 %v946, %v1138
        %1140 = vmatprep.mubr.bf16.mxu0 0
        %1141 = vmatmul.mubr.bf16.gmra.mxu0 %v312
        %v1142 = vpop.f32.mrf.mxu0
        %v1143 = vadd.f32 %v950, %v1142
        %v1144 = vpop.f32.mrf.mxu0
        %v1145 = vadd.f32 %v952, %v1144
        %v1146 = vpop.f32.mrf.mxu0
        %v1147 = vadd.f32 %v954, %v1146
        %v1148 = vpop.f32.mrf.mxu0
        %v1149 = vadd.f32 %v956, %v1148
        %1150 = vmatprep.mubr.bf16.mxu0 0
        %1151 = vmatmul.mubr.bf16.gmra.mxu0 %v315
        %v1152 = vpop.f32.mrf.mxu0
        %v1153 = vadd.f32 %v960, %v1152
        %v1154 = vpop.f32.mrf.mxu0
        %v1155 = vadd.f32 %v962, %v1154
        %v1156 = vpop.f32.mrf.mxu0
        %v1157 = vadd.f32 %v964, %v1156
        %v1158 = vpop.f32.mrf.mxu0
        %v1159 = vadd.f32 %v966, %v1158
        %1160 = vmatprep.mubr.bf16.mxu0 0
        %1161 = vmatmul.mubr.bf16.gmra.mxu0 %v318
        %v1162 = vpop.f32.mrf.mxu0
        %v1163 = vadd.f32 %v970, %v1162
        %v1164 = vpop.f32.mrf.mxu0
        %v1165 = vadd.f32 %v972, %v1164
        %v1166 = vpop.f32.mrf.mxu0
        %v1167 = vadd.f32 %v974, %v1166
        %v1168 = vpop.f32.mrf.mxu0
        %v1169 = vadd.f32 %v976, %v1168
        %1170 = vmatprep.mubr.bf16.mxu0 0
        %1171 = vmatmul.mubr.bf16.gmra.mxu0 %v321
        %v1172 = vpop.f32.mrf.mxu0
        %v1173 = vadd.f32 %v980, %v1172
        %v1174 = vpop.f32.mrf.mxu0
        %v1175 = vadd.f32 %v982, %v1174
        %v1176 = vpop.f32.mrf.mxu0
        %v1177 = vadd.f32 %v984, %v1176
        %v1178 = vpop.f32.mrf.mxu0
        %v1179 = vadd.f32 %v986, %v1178
        %1180 = vmatprep.mubr.bf16.mxu0 0
        %1181 = vmatmul.mubr.bf16.gmra.mxu0 %v324
        %v1182 = vpop.f32.mrf.mxu0
        %v1183 = vadd.f32 %v990, %v1182
        %v1184 = vpop.f32.mrf.mxu0
        %v1185 = vadd.f32 %v992, %v1184
        %v1186 = vpop.f32.mrf.mxu0
        %v1187 = vadd.f32 %v994, %v1186
        %v1188 = vpop.f32.mrf.mxu0
        %v1189 = vadd.f32 %v996, %v1188
        %1190 = vdwg.mxu0
        %1191 = vmatprep.subr.bf16.mxu0 0
        %1192 = vmatpush1.bf16.msra.mxu0 %v684
        %1193 = vmatprep.subr.bf16.mxu0 0
        %1194 = vmatpush1.bf16.msra.mxu0 %v681
        %1195 = vmatprep.subr.bf16.mxu0 0
        %1196 = vmatpush1.bf16.msra.mxu0 %v678
        %1197 = vmatprep.subr.bf16.mxu0 0
        %1198 = vmatpush1.bf16.msra.mxu0 %v675
        %1199 = vmatprep.subr.bf16.mxu0 0
        %1200 = vmatpush1.bf16.msra.mxu0 %v672
        %1201 = vmatprep.subr.bf16.mxu0 0
        %1202 = vmatpush1.bf16.msra.mxu0 %v669
        %1203 = vmatprep.subr.bf16.mxu0 0
        %1204 = vmatpush1.bf16.msra.mxu0 %v666
        %1205 = vmatprep.subr.bf16.mxu0 0
        %1206 = vmatpush1.bf16.msra.mxu0 %v663
        %1207 = vmatprep.subr.bf16.mxu0 0
        %1208 = vmatpush2.bf16.msra.mxu0 %v708
        %1209 = vmatprep.subr.bf16.mxu0 0
        %1210 = vmatpush2.bf16.msra.mxu0 %v705
        %1211 = vmatprep.subr.bf16.mxu0 0
        %1212 = vmatpush2.bf16.msra.mxu0 %v702
        %1213 = vmatprep.subr.bf16.mxu0 0
        %1214 = vmatpush2.bf16.msra.mxu0 %v699
        %1215 = vmatprep.subr.bf16.mxu0 0
        %1216 = vmatpush2.bf16.msra.mxu0 %v696
        %1217 = vmatprep.subr.bf16.mxu0 0
        %1218 = vmatpush2.bf16.msra.mxu0 %v693
        %1219 = vmatprep.subr.bf16.mxu0 0
        %1220 = vmatpush2.bf16.msra.mxu0 %v690
        %1221 = vmatprep.subr.bf16.mxu0 0
        %1222 = vmatpush2.bf16.msra.mxu0 %v687
        %1223 = vmatprep.mubr.bf16.mxu0 %v278
        %1224 = vmatmul.mubr.bf16.gmra.mxu0 %v277
        %v1225 = vpop.f32.mrf.mxu0
        %v1226 = vadd.f32 0.0, %v1225
        %v1227 = vpop.f32.mrf.mxu0
        %v1228 = vpop.f32.mrf.mxu0
        %v1229 = vadd.f32 0.0, %v1228
        %v1230 = vpop.f32.mrf.mxu0
        %1231 = vmatprep.mubr.bf16.mxu0 %v281
        %1232 = vmatmul.mubr.bf16.gmra.mxu0 %v280
        %v1233 = vpop.f32.mrf.mxu0
        %v1234 = vadd.f32 0.0, %v1233
        %v1235 = vpop.f32.mrf.mxu0
        %v1236 = vpop.f32.mrf.mxu0
        %v1237 = vadd.f32 0.0, %v1236
        %v1238 = vpop.f32.mrf.mxu0
        %1239 = vmatprep.mubr.bf16.mxu0 %v284
        %1240 = vmatmul.mubr.bf16.gmra.mxu0 %v283
        %v1241 = vpop.f32.mrf.mxu0
        %v1242 = vadd.f32 0.0, %v1241
        %v1243 = vpop.f32.mrf.mxu0
        %v1244 = vpop.f32.mrf.mxu0
        %v1245 = vadd.f32 0.0, %v1244
        %v1246 = vpop.f32.mrf.mxu0
        %1247 = vmatprep.mubr.bf16.mxu0 %v287
        %1248 = vmatmul.mubr.bf16.gmra.mxu0 %v286
        %v1249 = vpop.f32.mrf.mxu0
        %v1250 = vadd.f32 0.0, %v1249
        %v1251 = vpop.f32.mrf.mxu0
        %v1252 = vpop.f32.mrf.mxu0
        %v1253 = vadd.f32 0.0, %v1252
        %v1254 = vpop.f32.mrf.mxu0
        %1255 = vmatprep.mubr.bf16.mxu0 %v290
        %1256 = vmatmul.mubr.bf16.gmra.mxu0 %v289
        %v1257 = vpop.f32.mrf.mxu0
        %v1258 = vadd.f32 0.0, %v1257
        %v1259 = vpop.f32.mrf.mxu0
        %v1260 = vpop.f32.mrf.mxu0
        %v1261 = vadd.f32 0.0, %v1260
        %v1262 = vpop.f32.mrf.mxu0
        %1263 = vmatprep.mubr.bf16.mxu0 %v293
        %1264 = vmatmul.mubr.bf16.gmra.mxu0 %v292
        %v1265 = vpop.f32.mrf.mxu0
        %v1266 = vadd.f32 0.0, %v1265
        %v1267 = vpop.f32.mrf.mxu0
        %v1268 = vpop.f32.mrf.mxu0
        %v1269 = vadd.f32 0.0, %v1268
        %v1270 = vpop.f32.mrf.mxu0
        %1271 = vmatprep.mubr.bf16.mxu0 %v296
        %1272 = vmatmul.mubr.bf16.gmra.mxu0 %v295
        %v1273 = vpop.f32.mrf.mxu0
        %v1274 = vadd.f32 0.0, %v1273
        %v1275 = vpop.f32.mrf.mxu0
        %v1276 = vpop.f32.mrf.mxu0
        %v1277 = vadd.f32 0.0, %v1276
        %v1278 = vpop.f32.mrf.mxu0
        %1279 = vmatprep.mubr.bf16.mxu0 %v299
        %1280 = vmatmul.mubr.bf16.gmra.mxu0 %v298
        %v1281 = vpop.f32.mrf.mxu0
        %v1282 = vadd.f32 0.0, %v1281
        %v1283 = vpop.f32.mrf.mxu0
        %v1284 = vpop.f32.mrf.mxu0
        %v1285 = vadd.f32 0.0, %v1284
        %v1286 = vpop.f32.mrf.mxu0
        %1287 = vmatprep.mubr.bf16.mxu0 %v302
        %1288 = vmatmul.mubr.bf16.gmra.mxu0 %v301
        %v1289 = vpop.f32.mrf.mxu0
        %v1290 = vadd.f32 0.0, %v1289
        %v1291 = vpop.f32.mrf.mxu0
        %v1292 = vpop.f32.mrf.mxu0
        %v1293 = vadd.f32 0.0, %v1292
        %v1294 = vpop.f32.mrf.mxu0
        %1295 = vmatprep.mubr.bf16.mxu0 %v305
        %1296 = vmatmul.mubr.bf16.gmra.mxu0 %v304
        %v1297 = vpop.f32.mrf.mxu0
        %v1298 = vadd.f32 0.0, %v1297
        %v1299 = vpop.f32.mrf.mxu0
        %v1300 = vpop.f32.mrf.mxu0
        %v1301 = vadd.f32 0.0, %v1300
        %v1302 = vpop.f32.mrf.mxu0
        %1303 = vmatprep.mubr.bf16.mxu0 %v308
        %1304 = vmatmul.mubr.bf16.gmra.mxu0 %v307
        %v1305 = vpop.f32.mrf.mxu0
        %v1306 = vadd.f32 0.0, %v1305
        %v1307 = vpop.f32.mrf.mxu0
        %v1308 = vpop.f32.mrf.mxu0
        %v1309 = vadd.f32 0.0, %v1308
        %v1310 = vpop.f32.mrf.mxu0
        %1311 = vmatprep.mubr.bf16.mxu0 %v311
        %1312 = vmatmul.mubr.bf16.gmra.mxu0 %v310
        %v1313 = vpop.f32.mrf.mxu0
        %v1314 = vadd.f32 0.0, %v1313
        %v1315 = vpop.f32.mrf.mxu0
        %v1316 = vpop.f32.mrf.mxu0
        %v1317 = vadd.f32 0.0, %v1316
        %v1318 = vpop.f32.mrf.mxu0
        %1319 = vmatprep.mubr.bf16.mxu0 %v314
        %1320 = vmatmul.mubr.bf16.gmra.mxu0 %v313
        %v1321 = vpop.f32.mrf.mxu0
        %v1322 = vadd.f32 0.0, %v1321
        %v1323 = vpop.f32.mrf.mxu0
        %v1324 = vpop.f32.mrf.mxu0
        %v1325 = vadd.f32 0.0, %v1324
        %v1326 = vpop.f32.mrf.mxu0
        %1327 = vmatprep.mubr.bf16.mxu0 %v317
        %1328 = vmatmul.mubr.bf16.gmra.mxu0 %v316
        %v1329 = vpop.f32.mrf.mxu0
        %v1330 = vadd.f32 0.0, %v1329
        %v1331 = vpop.f32.mrf.mxu0
        %v1332 = vpop.f32.mrf.mxu0
        %v1333 = vadd.f32 0.0, %v1332
        %v1334 = vpop.f32.mrf.mxu0
        %1335 = vmatprep.mubr.bf16.mxu0 %v320
        %1336 = vmatmul.mubr.bf16.gmra.mxu0 %v319
        %v1337 = vpop.f32.mrf.mxu0
        %v1338 = vadd.f32 0.0, %v1337
        %v1339 = vpop.f32.mrf.mxu0
        %v1340 = vpop.f32.mrf.mxu0
        %v1341 = vadd.f32 0.0, %v1340
        %v1342 = vpop.f32.mrf.mxu0
        %1343 = vmatprep.mubr.bf16.mxu0 %v323
        %1344 = vmatmul.mubr.bf16.gmra.mxu0 %v322
        %v1345 = vpop.f32.mrf.mxu0
        %v1346 = vadd.f32 0.0, %v1345
        %v1347 = vpop.f32.mrf.mxu0
        %v1348 = vpop.f32.mrf.mxu0
        %v1349 = vadd.f32 0.0, %v1348
        %v1350 = vpop.f32.mrf.mxu0
        %1351 = vdwg.mxu0
        %1352 = vmatprep.subr.bf16.mxu0 0
        %1353 = vmatpush1.bf16.msra.mxu0 %v732
        %1354 = vmatprep.subr.bf16.mxu0 0
        %1355 = vmatpush1.bf16.msra.mxu0 %v729
        %1356 = vmatprep.subr.bf16.mxu0 0
        %1357 = vmatpush1.bf16.msra.mxu0 %v726
        %1358 = vmatprep.subr.bf16.mxu0 0
        %1359 = vmatpush1.bf16.msra.mxu0 %v723
        %1360 = vmatprep.subr.bf16.mxu0 0
        %1361 = vmatpush1.bf16.msra.mxu0 %v720
        %1362 = vmatprep.subr.bf16.mxu0 0
        %1363 = vmatpush1.bf16.msra.mxu0 %v717
        %1364 = vmatprep.subr.bf16.mxu0 0
        %1365 = vmatpush1.bf16.msra.mxu0 %v714
        %1366 = vmatprep.subr.bf16.mxu0 0
        %1367 = vmatpush1.bf16.msra.mxu0 %v711
        %1368 = vmatprep.subr.bf16.mxu0 0
        %1369 = vmatpush2.bf16.msra.mxu0 0
        %1370 = vmatprep.subr.bf16.mxu0 0
        %1371 = vmatpush2.bf16.msra.mxu0 0
        %1372 = vmatprep.subr.bf16.mxu0 0
        %1373 = vmatpush2.bf16.msra.mxu0 0
        %1374 = vmatprep.subr.bf16.mxu0 0
        %1375 = vmatpush2.bf16.msra.mxu0 0
        %1376 = vmatprep.subr.bf16.mxu0 0
        %1377 = vmatpush2.bf16.msra.mxu0 0
        %1378 = vmatprep.subr.bf16.mxu0 0
        %1379 = vmatpush2.bf16.msra.mxu0 0
        %1380 = vmatprep.subr.bf16.mxu0 0
        %1381 = vmatpush2.bf16.msra.mxu0 0
        %1382 = vmatprep.subr.bf16.mxu0 0
        %1383 = vmatpush2.bf16.msra.mxu0 0
        %1384 = vmatprep.mubr.bf16.mxu0 0
        %1385 = vmatmul.mubr.bf16.gmra.mxu0 %v279
        %v1386 = vpop.f32.mrf.mxu0
        %v1387 = vadd.f32 %v1226, %v1386
        %v1388 = vpop.f32.mrf.mxu0
        %v1389 = vpop.f32.mrf.mxu0
        %v1390 = vadd.f32 %v1229, %v1389
        %v1391 = vpop.f32.mrf.mxu0
        %1392 = vmatprep.mubr.bf16.mxu0 0
        %1393 = vmatmul.mubr.bf16.gmra.mxu0 %v282
        %v1394 = vpop.f32.mrf.mxu0
        %v1395 = vadd.f32 %v1234, %v1394
        %v1396 = vpop.f32.mrf.mxu0
        %v1397 = vpop.f32.mrf.mxu0
        %v1398 = vadd.f32 %v1237, %v1397
        %v1399 = vpop.f32.mrf.mxu0
        %1400 = vmatprep.mubr.bf16.mxu0 0
        %1401 = vmatmul.mubr.bf16.gmra.mxu0 %v285
        %v1402 = vpop.f32.mrf.mxu0
        %v1403 = vadd.f32 %v1242, %v1402
        %v1404 = vpop.f32.mrf.mxu0
        %v1405 = vpop.f32.mrf.mxu0
        %v1406 = vadd.f32 %v1245, %v1405
        %v1407 = vpop.f32.mrf.mxu0
        %1408 = vmatprep.mubr.bf16.mxu0 0
        %1409 = vmatmul.mubr.bf16.gmra.mxu0 %v288
        %v1410 = vpop.f32.mrf.mxu0
        %v1411 = vadd.f32 %v1250, %v1410
        %v1412 = vpop.f32.mrf.mxu0
        %v1413 = vpop.f32.mrf.mxu0
        %v1414 = vadd.f32 %v1253, %v1413
        %v1415 = vpop.f32.mrf.mxu0
        %1416 = vmatprep.mubr.bf16.mxu0 0
        %1417 = vmatmul.mubr.bf16.gmra.mxu0 %v291
        %v1418 = vpop.f32.mrf.mxu0
        %v1419 = vadd.f32 %v1258, %v1418
        %v1420 = vpop.f32.mrf.mxu0
        %v1421 = vpop.f32.mrf.mxu0
        %v1422 = vadd.f32 %v1261, %v1421
        %v1423 = vpop.f32.mrf.mxu0
        %1424 = vmatprep.mubr.bf16.mxu0 0
        %1425 = vmatmul.mubr.bf16.gmra.mxu0 %v294
        %v1426 = vpop.f32.mrf.mxu0
        %v1427 = vadd.f32 %v1266, %v1426
        %v1428 = vpop.f32.mrf.mxu0
        %v1429 = vpop.f32.mrf.mxu0
        %v1430 = vadd.f32 %v1269, %v1429
        %v1431 = vpop.f32.mrf.mxu0
        %1432 = vmatprep.mubr.bf16.mxu0 0
        %1433 = vmatmul.mubr.bf16.gmra.mxu0 %v297
        %v1434 = vpop.f32.mrf.mxu0
        %v1435 = vadd.f32 %v1274, %v1434
        %v1436 = vpop.f32.mrf.mxu0
        %v1437 = vpop.f32.mrf.mxu0
        %v1438 = vadd.f32 %v1277, %v1437
        %v1439 = vpop.f32.mrf.mxu0
        %1440 = vmatprep.mubr.bf16.mxu0 0
        %1441 = vmatmul.mubr.bf16.gmra.mxu0 %v300
        %v1442 = vpop.f32.mrf.mxu0
        %v1443 = vadd.f32 %v1282, %v1442
        %v1444 = vpop.f32.mrf.mxu0
        %v1445 = vpop.f32.mrf.mxu0
        %v1446 = vadd.f32 %v1285, %v1445
        %v1447 = vpop.f32.mrf.mxu0
        %1448 = vmatprep.mubr.bf16.mxu0 0
        %1449 = vmatmul.mubr.bf16.gmra.mxu0 %v303
        %v1450 = vpop.f32.mrf.mxu0
        %v1451 = vadd.f32 %v1290, %v1450
        %v1452 = vpop.f32.mrf.mxu0
        %v1453 = vpop.f32.mrf.mxu0
        %v1454 = vadd.f32 %v1293, %v1453
        %v1455 = vpop.f32.mrf.mxu0
        %1456 = vmatprep.mubr.bf16.mxu0 0
        %1457 = vmatmul.mubr.bf16.gmra.mxu0 %v306
        %v1458 = vpop.f32.mrf.mxu0
        %v1459 = vadd.f32 %v1298, %v1458
        %v1460 = vpop.f32.mrf.mxu0
        %v1461 = vpop.f32.mrf.mxu0
        %v1462 = vadd.f32 %v1301, %v1461
        %v1463 = vpop.f32.mrf.mxu0
        %1464 = vmatprep.mubr.bf16.mxu0 0
        %1465 = vmatmul.mubr.bf16.gmra.mxu0 %v309
        %v1466 = vpop.f32.mrf.mxu0
        %v1467 = vadd.f32 %v1306, %v1466
        %v1468 = vpop.f32.mrf.mxu0
        %v1469 = vpop.f32.mrf.mxu0
        %v1470 = vadd.f32 %v1309, %v1469
        %v1471 = vpop.f32.mrf.mxu0
        %1472 = vmatprep.mubr.bf16.mxu0 0
        %1473 = vmatmul.mubr.bf16.gmra.mxu0 %v312
        %v1474 = vpop.f32.mrf.mxu0
        %v1475 = vadd.f32 %v1314, %v1474
        %v1476 = vpop.f32.mrf.mxu0
        %v1477 = vpop.f32.mrf.mxu0
        %v1478 = vadd.f32 %v1317, %v1477
        %v1479 = vpop.f32.mrf.mxu0
        %1480 = vmatprep.mubr.bf16.mxu0 0
        %1481 = vmatmul.mubr.bf16.gmra.mxu0 %v315
        %v1482 = vpop.f32.mrf.mxu0
        %v1483 = vadd.f32 %v1322, %v1482
        %v1484 = vpop.f32.mrf.mxu0
        %v1485 = vpop.f32.mrf.mxu0
        %v1486 = vadd.f32 %v1325, %v1485
        %v1487 = vpop.f32.mrf.mxu0
        %1488 = vmatprep.mubr.bf16.mxu0 0
        %1489 = vmatmul.mubr.bf16.gmra.mxu0 %v318
        %v1490 = vpop.f32.mrf.mxu0
        %v1491 = vadd.f32 %v1330, %v1490
        %v1492 = vpop.f32.mrf.mxu0
        %v1493 = vpop.f32.mrf.mxu0
        %v1494 = vadd.f32 %v1333, %v1493
        %v1495 = vpop.f32.mrf.mxu0
        %1496 = vmatprep.mubr.bf16.mxu0 0
        %1497 = vmatmul.mubr.bf16.gmra.mxu0 %v321
        %v1498 = vpop.f32.mrf.mxu0
        %v1499 = vadd.f32 %v1338, %v1498
        %v1500 = vpop.f32.mrf.mxu0
        %v1501 = vpop.f32.mrf.mxu0
        %v1502 = vadd.f32 %v1341, %v1501
        %v1503 = vpop.f32.mrf.mxu0
        %1504 = vmatprep.mubr.bf16.mxu0 0
        %1505 = vmatmul.mubr.bf16.gmra.mxu0 %v324
        %v1506 = vpop.f32.mrf.mxu0
        %v1507 = vadd.f32 %v1346, %v1506
        %v1508 = vpop.f32.mrf.mxu0
        %v1509 = vpop.f32.mrf.mxu0
        %v1510 = vadd.f32 %v1349, %v1509
        %v1511 = vpop.f32.mrf.mxu0
        %1512 = vdwg.mxu0
        %v1513 = vpack.c.bf16 %v1037, %v1033
        %v1514 = vpack.c.bf16 %v1047, %v1043
        %v1515 = vpack.c.bf16 %v1057, %v1053
        %v1516 = vpack.c.bf16 %v1067, %v1063
        %v1517 = vpack.c.bf16 %v1077, %v1073
        %v1518 = vpack.c.bf16 %v1087, %v1083
        %v1519 = vpack.c.bf16 %v1097, %v1093
        %v1520 = vpack.c.bf16 %v1107, %v1103
        %v1521 = vpack.c.bf16 %v1117, %v1113
        %v1522 = vpack.c.bf16 %v1127, %v1123
        %v1523 = vpack.c.bf16 %v1137, %v1133
        %v1524 = vpack.c.bf16 %v1147, %v1143
        %v1525 = vpack.c.bf16 %v1157, %v1153
        %v1526 = vpack.c.bf16 %v1167, %v1163
        %v1527 = vpack.c.bf16 %v1177, %v1173
        %v1528 = vpack.c.bf16 %v1187, %v1183
        %v1529 = vpack.c.bf16 %v1039, %v1035
        %v1530 = vpack.c.bf16 %v1049, %v1045
        %v1531 = vpack.c.bf16 %v1059, %v1055
        %v1532 = vpack.c.bf16 %v1069, %v1065
        %v1533 = vpack.c.bf16 %v1079, %v1075
        %v1534 = vpack.c.bf16 %v1089, %v1085
        %v1535 = vpack.c.bf16 %v1099, %v1095
        %v1536 = vpack.c.bf16 %v1109, %v1105
        %v1537 = vpack.c.bf16 %v1119, %v1115
        %v1538 = vpack.c.bf16 %v1129, %v1125
        %v1539 = vpack.c.bf16 %v1139, %v1135
        %v1540 = vpack.c.bf16 %v1149, %v1145
        %v1541 = vpack.c.bf16 %v1159, %v1155
        %v1542 = vpack.c.bf16 %v1169, %v1165
        %v1543 = vpack.c.bf16 %v1179, %v1175
        %v1544 = vpack.c.bf16 %v1189, %v1185
        %v1545 = vpack.c.bf16 %v1390, %v1387
        %v1546 = vpack.c.bf16 %v1398, %v1395
        %v1547 = vpack.c.bf16 %v1406, %v1403
        %v1548 = vpack.c.bf16 %v1414, %v1411
        %v1549 = vpack.c.bf16 %v1422, %v1419
        %v1550 = vpack.c.bf16 %v1430, %v1427
        %v1551 = vpack.c.bf16 %v1438, %v1435
        %v1552 = vpack.c.bf16 %v1446, %v1443
        %v1553 = vpack.c.bf16 %v1454, %v1451
        %v1554 = vpack.c.bf16 %v1462, %v1459
        %v1555 = vpack.c.bf16 %v1470, %v1467
        %v1556 = vpack.c.bf16 %v1478, %v1475
        %v1557 = vpack.c.bf16 %v1486, %v1483
        %v1558 = vpack.c.bf16 %v1494, %v1491
        %v1559 = vpack.c.bf16 %v1502, %v1499
        %v1560 = vpack.c.bf16 %v1510, %v1507
        %1561 = vmatprep.subr.bf16.mxu0 0
        %1562 = vmatpush1.bf16.xpose.msra.mxu0 %v1520
        %1563 = vmatprep.subr.bf16.mxu0 0
        %1564 = vmatpush1.bf16.xpose.msra.mxu0 %v1519
        %1565 = vmatprep.subr.bf16.mxu0 0
        %1566 = vmatpush1.bf16.xpose.msra.mxu0 %v1518
        %1567 = vmatprep.subr.bf16.mxu0 0
        %1568 = vmatpush1.bf16.xpose.msra.mxu0 %v1517
        %1569 = vmatprep.subr.bf16.mxu0 0
        %1570 = vmatpush1.bf16.xpose.msra.mxu0 %v1516
        %1571 = vmatprep.subr.bf16.mxu0 0
        %1572 = vmatpush1.bf16.xpose.msra.mxu0 %v1515
        %1573 = vmatprep.subr.bf16.mxu0 0
        %1574 = vmatpush1.bf16.xpose.msra.mxu0 %v1514
        %1575 = vmatprep.subr.bf16.mxu0 0
        %1576 = vmatpush1.bf16.xpose.msra.mxu0 %v1513
        %1577 = vmatprep.subr.bf16.mxu0 0
        %1578 = vmatpush2.bf16.xpose.msra.mxu0 0
        %1579 = vmatprep.subr.bf16.mxu0 0
        %1580 = vmatpush2.bf16.xpose.msra.mxu0 0
        %1581 = vmatprep.subr.bf16.mxu0 0
        %1582 = vmatpush2.bf16.xpose.msra.mxu0 0
        %1583 = vmatprep.subr.bf16.mxu0 0
        %1584 = vmatpush2.bf16.xpose.msra.mxu0 0
        %1585 = vmatprep.subr.bf16.mxu0 0
        %1586 = vmatpush2.bf16.xpose.msra.mxu0 0
        %1587 = vmatprep.subr.bf16.mxu0 0
        %1588 = vmatpush2.bf16.xpose.msra.mxu0 0
        %1589 = vmatprep.subr.bf16.mxu0 0
        %1590 = vmatpush2.bf16.xpose.msra.mxu0 0
        %1591 = vmatprep.subr.bf16.mxu0 0
        %1592 = vmatpush2.bf16.xpose.msra.mxu0 0
        %1593 = vmatprep.mubr.bf16.mxu0 0
        %1594 = vmatmul.mubr.bf16.gmra.mxu0 %v1529
        %v1595 = vpop.f32.mrf.mxu0
        %v1596 = vadd.f32 0.0, %v1595
        %v1597 = vpop.f32.mrf.mxu0
        %v1598 = vpop.f32.mrf.mxu0
        %v1599 = vadd.f32 0.0, %v1598
        %v1600 = vpop.f32.mrf.mxu0
        %1601 = vmatprep.mubr.bf16.mxu0 0
        %1602 = vmatmul.mubr.bf16.gmra.mxu0 %v1530
        %v1603 = vpop.f32.mrf.mxu0
        %v1604 = vadd.f32 0.0, %v1603
        %v1605 = vpop.f32.mrf.mxu0
        %v1606 = vpop.f32.mrf.mxu0
        %v1607 = vadd.f32 0.0, %v1606
        %v1608 = vpop.f32.mrf.mxu0
        %1609 = vmatprep.mubr.bf16.mxu0 0
        %1610 = vmatmul.mubr.bf16.gmra.mxu0 %v1531
        %v1611 = vpop.f32.mrf.mxu0
        %v1612 = vadd.f32 0.0, %v1611
        %v1613 = vpop.f32.mrf.mxu0
        %v1614 = vpop.f32.mrf.mxu0
        %v1615 = vadd.f32 0.0, %v1614
        %v1616 = vpop.f32.mrf.mxu0
        %1617 = vmatprep.mubr.bf16.mxu0 0
        %1618 = vmatmul.mubr.bf16.gmra.mxu0 %v1532
        %v1619 = vpop.f32.mrf.mxu0
        %v1620 = vadd.f32 0.0, %v1619
        %v1621 = vpop.f32.mrf.mxu0
        %v1622 = vpop.f32.mrf.mxu0
        %v1623 = vadd.f32 0.0, %v1622
        %v1624 = vpop.f32.mrf.mxu0
        %1625 = vmatprep.mubr.bf16.mxu0 0
        %1626 = vmatmul.mubr.bf16.gmra.mxu0 %v1533
        %v1627 = vpop.f32.mrf.mxu0
        %v1628 = vadd.f32 0.0, %v1627
        %v1629 = vpop.f32.mrf.mxu0
        %v1630 = vpop.f32.mrf.mxu0
        %v1631 = vadd.f32 0.0, %v1630
        %v1632 = vpop.f32.mrf.mxu0
        %1633 = vmatprep.mubr.bf16.mxu0 0
        %1634 = vmatmul.mubr.bf16.gmra.mxu0 %v1534
        %v1635 = vpop.f32.mrf.mxu0
        %v1636 = vadd.f32 0.0, %v1635
        %v1637 = vpop.f32.mrf.mxu0
        %v1638 = vpop.f32.mrf.mxu0
        %v1639 = vadd.f32 0.0, %v1638
        %v1640 = vpop.f32.mrf.mxu0
        %1641 = vmatprep.mubr.bf16.mxu0 0
        %1642 = vmatmul.mubr.bf16.gmra.mxu0 %v1535
        %v1643 = vpop.f32.mrf.mxu0
        %v1644 = vadd.f32 0.0, %v1643
        %v1645 = vpop.f32.mrf.mxu0
        %v1646 = vpop.f32.mrf.mxu0
        %v1647 = vadd.f32 0.0, %v1646
        %v1648 = vpop.f32.mrf.mxu0
        %1649 = vmatprep.mubr.bf16.mxu0 0
        %1650 = vmatmul.mubr.bf16.gmra.mxu0 %v1536
        %v1651 = vpop.f32.mrf.mxu0
        %v1652 = vadd.f32 0.0, %v1651
        %v1653 = vpop.f32.mrf.mxu0
        %v1654 = vpop.f32.mrf.mxu0
        %v1655 = vadd.f32 0.0, %v1654
        %v1656 = vpop.f32.mrf.mxu0
        %1657 = vdwg.mxu0
        %1658 = vmatprep.subr.bf16.mxu0 0
        %1659 = vmatpush1.bf16.xpose.msra.mxu0 %v1528
        %1660 = vmatprep.subr.bf16.mxu0 0
        %1661 = vmatpush1.bf16.xpose.msra.mxu0 %v1527
        %1662 = vmatprep.subr.bf16.mxu0 0
        %1663 = vmatpush1.bf16.xpose.msra.mxu0 %v1526
        %1664 = vmatprep.subr.bf16.mxu0 0
        %1665 = vmatpush1.bf16.xpose.msra.mxu0 %v1525
        %1666 = vmatprep.subr.bf16.mxu0 0
        %1667 = vmatpush1.bf16.xpose.msra.mxu0 %v1524
        %1668 = vmatprep.subr.bf16.mxu0 0
        %1669 = vmatpush1.bf16.xpose.msra.mxu0 %v1523
        %1670 = vmatprep.subr.bf16.mxu0 0
        %1671 = vmatpush1.bf16.xpose.msra.mxu0 %v1522
        %1672 = vmatprep.subr.bf16.mxu0 0
        %1673 = vmatpush1.bf16.xpose.msra.mxu0 %v1521
        %1674 = vmatprep.subr.bf16.mxu0 0
        %1675 = vmatpush2.bf16.xpose.msra.mxu0 0
        %1676 = vmatprep.subr.bf16.mxu0 0
        %1677 = vmatpush2.bf16.xpose.msra.mxu0 0
        %1678 = vmatprep.subr.bf16.mxu0 0
        %1679 = vmatpush2.bf16.xpose.msra.mxu0 0
        %1680 = vmatprep.subr.bf16.mxu0 0
        %1681 = vmatpush2.bf16.xpose.msra.mxu0 0
        %1682 = vmatprep.subr.bf16.mxu0 0
        %1683 = vmatpush2.bf16.xpose.msra.mxu0 0
        %1684 = vmatprep.subr.bf16.mxu0 0
        %1685 = vmatpush2.bf16.xpose.msra.mxu0 0
        %1686 = vmatprep.subr.bf16.mxu0 0
        %1687 = vmatpush2.bf16.xpose.msra.mxu0 0
        %1688 = vmatprep.subr.bf16.mxu0 0
        %1689 = vmatpush2.bf16.xpose.msra.mxu0 0
        %1690 = vmatprep.mubr.bf16.mxu0 0
        %1691 = vmatmul.mubr.bf16.gmra.mxu0 %v1537
        %v1692 = vpop.f32.mrf.mxu0
        %v1693 = vadd.f32 0.0, %v1692
        %v1694 = vpop.f32.mrf.mxu0
        %v1695 = vpop.f32.mrf.mxu0
        %v1696 = vadd.f32 0.0, %v1695
        %v1697 = vpop.f32.mrf.mxu0
        %1698 = vmatprep.mubr.bf16.mxu0 0
        %1699 = vmatmul.mubr.bf16.gmra.mxu0 %v1538
        %v1700 = vpop.f32.mrf.mxu0
        %v1701 = vadd.f32 0.0, %v1700
        %v1702 = vpop.f32.mrf.mxu0
        %v1703 = vpop.f32.mrf.mxu0
        %v1704 = vadd.f32 0.0, %v1703
        %v1705 = vpop.f32.mrf.mxu0
        %1706 = vmatprep.mubr.bf16.mxu0 0
        %1707 = vmatmul.mubr.bf16.gmra.mxu0 %v1539
        %v1708 = vpop.f32.mrf.mxu0
        %v1709 = vadd.f32 0.0, %v1708
        %v1710 = vpop.f32.mrf.mxu0
        %v1711 = vpop.f32.mrf.mxu0
        %v1712 = vadd.f32 0.0, %v1711
        %v1713 = vpop.f32.mrf.mxu0
        %1714 = vmatprep.mubr.bf16.mxu0 0
        %1715 = vmatmul.mubr.bf16.gmra.mxu0 %v1540
        %v1716 = vpop.f32.mrf.mxu0
        %v1717 = vadd.f32 0.0, %v1716
        %v1718 = vpop.f32.mrf.mxu0
        %v1719 = vpop.f32.mrf.mxu0
        %v1720 = vadd.f32 0.0, %v1719
        %v1721 = vpop.f32.mrf.mxu0
        %1722 = vmatprep.mubr.bf16.mxu0 0
        %1723 = vmatmul.mubr.bf16.gmra.mxu0 %v1541
        %v1724 = vpop.f32.mrf.mxu0
        %v1725 = vadd.f32 0.0, %v1724
        %v1726 = vpop.f32.mrf.mxu0
        %v1727 = vpop.f32.mrf.mxu0
        %v1728 = vadd.f32 0.0, %v1727
        %v1729 = vpop.f32.mrf.mxu0
        %1730 = vmatprep.mubr.bf16.mxu0 0
        %1731 = vmatmul.mubr.bf16.gmra.mxu0 %v1542
        %v1732 = vpop.f32.mrf.mxu0
        %v1733 = vadd.f32 0.0, %v1732
        %v1734 = vpop.f32.mrf.mxu0
        %v1735 = vpop.f32.mrf.mxu0
        %v1736 = vadd.f32 0.0, %v1735
        %v1737 = vpop.f32.mrf.mxu0
        %1738 = vmatprep.mubr.bf16.mxu0 0
        %1739 = vmatmul.mubr.bf16.gmra.mxu0 %v1543
        %v1740 = vpop.f32.mrf.mxu0
        %v1741 = vadd.f32 0.0, %v1740
        %v1742 = vpop.f32.mrf.mxu0
        %v1743 = vpop.f32.mrf.mxu0
        %v1744 = vadd.f32 0.0, %v1743
        %v1745 = vpop.f32.mrf.mxu0
        %1746 = vmatprep.mubr.bf16.mxu0 0
        %1747 = vmatmul.mubr.bf16.gmra.mxu0 %v1544
        %v1748 = vpop.f32.mrf.mxu0
        %v1749 = vadd.f32 0.0, %v1748
        %v1750 = vpop.f32.mrf.mxu0
        %v1751 = vpop.f32.mrf.mxu0
        %v1752 = vadd.f32 0.0, %v1751
        %v1753 = vpop.f32.mrf.mxu0
        %1754 = vdwg.mxu0
        %v1755 = vlaneseq
        %v1756 = vshrl.u32 %v1755, 7
        %v1757 = vadd.s32 %v1756, 8
        %v1758 = vadd.s32 %v1756, 16
        %v1759 = vadd.s32 %v1756, 24
        %v1760 = vadd.s32 %v1756, 32
        %v1761 = vadd.s32 %v1756, 40
        %v1762 = vadd.s32 %v1756, 48
        %v1763 = vadd.s32 %v1756, 56
        %v1764 = vadd.s32 %v1756, 64
        %v1765 = vadd.s32 %v1756, 72
        %v1766 = vadd.s32 %v1756, 80
        %v1767 = vadd.s32 %v1756, 88
        %v1768 = vadd.s32 %v1756, 96
        %v1769 = vadd.s32 %v1756, 104
        %v1770 = vadd.s32 %v1756, 112
        %v1771 = vadd.s32 %v1756, 120
        %v1772 = vlaneseq
        %v1773 = vand.u32 %v1772, 127
        %vm1774 = vcmp.ge.s32.totalorder %v1756, %v1773
        %vm1775 = vcmp.ge.s32.totalorder %v1757, %v1773
        %vm1776 = vcmp.ge.s32.totalorder %v1758, %v1773
        %vm1777 = vcmp.ge.s32.totalorder %v1759, %v1773
        %vm1778 = vcmp.ge.s32.totalorder %v1760, %v1773
        %vm1779 = vcmp.ge.s32.totalorder %v1761, %v1773
        %vm1780 = vcmp.ge.s32.totalorder %v1762, %v1773
        %vm1781 = vcmp.ge.s32.totalorder %v1763, %v1773
        %vm1782 = vcmp.ge.s32.totalorder %v1764, %v1773
        %vm1783 = vcmp.ge.s32.totalorder %v1765, %v1773
        %vm1784 = vcmp.ge.s32.totalorder %v1766, %v1773
        %vm1785 = vcmp.ge.s32.totalorder %v1767, %v1773
        %vm1786 = vcmp.ge.s32.totalorder %v1768, %v1773
        %vm1787 = vcmp.ge.s32.totalorder %v1769, %v1773
        %vm1788 = vcmp.ge.s32.totalorder %v1770, %v1773
        %vm1789 = vcmp.ge.s32.totalorder %v1771, %v1773
        %v1790 = vsel %vm1774, 1, 0
        %v1791 = vsel %vm1775, 1, 0
        %v1792 = vsel %vm1776, 1, 0
        %v1793 = vsel %vm1777, 1, 0
        %v1794 = vsel %vm1778, 1, 0
        %v1795 = vsel %vm1779, 1, 0
        %v1796 = vsel %vm1780, 1, 0
        %v1797 = vsel %vm1781, 1, 0
        %v1798 = vsel %vm1782, 1, 0
        %v1799 = vsel %vm1783, 1, 0
        %v1800 = vsel %vm1784, 1, 0
        %v1801 = vsel %vm1785, 1, 0
        %v1802 = vsel %vm1786, 1, 0
        %v1803 = vsel %vm1787, 1, 0
        %v1804 = vsel %vm1788, 1, 0
        %v1805 = vsel %vm1789, 1, 0
        %vm1806 = vcmp.eq.s32.totalorder %v1790, 1
        %vm1807 = vcmp.eq.s32.totalorder %v1791, 1
        %vm1808 = vcmp.eq.s32.totalorder %v1792, 1
        %vm1809 = vcmp.eq.s32.totalorder %v1793, 1
        %vm1810 = vcmp.eq.s32.totalorder %v1794, 1
        %vm1811 = vcmp.eq.s32.totalorder %v1795, 1
        %vm1812 = vcmp.eq.s32.totalorder %v1796, 1
        %vm1813 = vcmp.eq.s32.totalorder %v1797, 1
        %vm1814 = vcmp.eq.s32.totalorder %v1798, 1
        %vm1815 = vcmp.eq.s32.totalorder %v1799, 1
        %vm1816 = vcmp.eq.s32.totalorder %v1800, 1
        %vm1817 = vcmp.eq.s32.totalorder %v1801, 1
        %vm1818 = vcmp.eq.s32.totalorder %v1802, 1
        %vm1819 = vcmp.eq.s32.totalorder %v1803, 1
        %vm1820 = vcmp.eq.s32.totalorder %v1804, 1
        %vm1821 = vcmp.eq.s32.totalorder %v1805, 1
        %v1822 = vsel %vm1806, %v1596, -inf
        %v1823 = vsel %vm1807, %v1599, -inf
        %v1824 = vsel %vm1808, %v1604, -inf
        %v1825 = vsel %vm1809, %v1607, -inf
        %v1826 = vsel %vm1810, %v1612, -inf
        %v1827 = vsel %vm1811, %v1615, -inf
        %v1828 = vsel %vm1812, %v1620, -inf
        %v1829 = vsel %vm1813, %v1623, -inf
        %v1830 = vsel %vm1814, %v1628, -inf
        %v1831 = vsel %vm1815, %v1631, -inf
        %v1832 = vsel %vm1816, %v1636, -inf
        %v1833 = vsel %vm1817, %v1639, -inf
        %v1834 = vsel %vm1818, %v1644, -inf
        %v1835 = vsel %vm1819, %v1647, -inf
        %v1836 = vsel %vm1820, %v1652, -inf
        %v1837 = vsel %vm1821, %v1655, -inf
        %v1838 = vsel %vm1806, %v1693, -inf
        %v1839 = vsel %vm1807, %v1696, -inf
        %v1840 = vsel %vm1808, %v1701, -inf
        %v1841 = vsel %vm1809, %v1704, -inf
        %v1842 = vsel %vm1810, %v1709, -inf
        %v1843 = vsel %vm1811, %v1712, -inf
        %v1844 = vsel %vm1812, %v1717, -inf
        %v1845 = vsel %vm1813, %v1720, -inf
        %v1846 = vsel %vm1814, %v1725, -inf
        %v1847 = vsel %vm1815, %v1728, -inf
        %v1848 = vsel %vm1816, %v1733, -inf
        %v1849 = vsel %vm1817, %v1736, -inf
        %v1850 = vsel %vm1818, %v1741, -inf
        %v1851 = vsel %vm1819, %v1744, -inf
        %v1852 = vsel %vm1820, %v1749, -inf
        %v1853 = vsel %vm1821, %v1752, -inf
        %1854 = vmax.xlane.f32.xlu0 %v1822
        %v1855 = vpop.xlane.xlu0 %1854
        %1856 = vmax.xlane.f32.xlu0 %v1823
        %v1857 = vpop.xlane.xlu0 %1856
        %1858 = vmax.xlane.f32.xlu0 %v1824
        %v1859 = vpop.xlane.xlu0 %1858
        %1860 = vmax.xlane.f32.xlu0 %v1825
        %v1861 = vpop.xlane.xlu0 %1860
        %1862 = vmax.xlane.f32.xlu0 %v1826
        %v1863 = vpop.xlane.xlu0 %1862
        %1864 = vmax.xlane.f32.xlu0 %v1827
        %v1865 = vpop.xlane.xlu0 %1864
        %1866 = vmax.xlane.f32.xlu0 %v1828
        %v1867 = vpop.xlane.xlu0 %1866
        %1868 = vmax.xlane.f32.xlu0 %v1829
        %v1869 = vpop.xlane.xlu0 %1868
        %1870 = vmax.xlane.f32.xlu0 %v1830
        %v1871 = vpop.xlane.xlu0 %1870
        %1872 = vmax.xlane.f32.xlu0 %v1831
        %v1873 = vpop.xlane.xlu0 %1872
        %1874 = vmax.xlane.f32.xlu0 %v1832
        %v1875 = vpop.xlane.xlu0 %1874
        %1876 = vmax.xlane.f32.xlu0 %v1833
        %v1877 = vpop.xlane.xlu0 %1876
        %1878 = vmax.xlane.f32.xlu0 %v1834
        %v1879 = vpop.xlane.xlu0 %1878
        %1880 = vmax.xlane.f32.xlu0 %v1835
        %v1881 = vpop.xlane.xlu0 %1880
        %1882 = vmax.xlane.f32.xlu0 %v1836
        %v1883 = vpop.xlane.xlu0 %1882
        %1884 = vmax.xlane.f32.xlu0 %v1837
        %v1885 = vpop.xlane.xlu0 %1884
        %1886 = vmax.xlane.f32.xlu0 %v1838
        %v1887 = vpop.xlane.xlu0 %1886
        %1888 = vmax.xlane.f32.xlu0 %v1839
        %v1889 = vpop.xlane.xlu0 %1888
        %1890 = vmax.xlane.f32.xlu0 %v1840
        %v1891 = vpop.xlane.xlu0 %1890
        %1892 = vmax.xlane.f32.xlu0 %v1841
        %v1893 = vpop.xlane.xlu0 %1892
        %1894 = vmax.xlane.f32.xlu0 %v1842
        %v1895 = vpop.xlane.xlu0 %1894
        %1896 = vmax.xlane.f32.xlu0 %v1843
        %v1897 = vpop.xlane.xlu0 %1896
        %1898 = vmax.xlane.f32.xlu0 %v1844
        %v1899 = vpop.xlane.xlu0 %1898
        %1900 = vmax.xlane.f32.xlu0 %v1845
        %v1901 = vpop.xlane.xlu0 %1900
        %1902 = vmax.xlane.f32.xlu0 %v1846
        %v1903 = vpop.xlane.xlu0 %1902
        %1904 = vmax.xlane.f32.xlu0 %v1847
        %v1905 = vpop.xlane.xlu0 %1904
        %1906 = vmax.xlane.f32.xlu0 %v1848
        %v1907 = vpop.xlane.xlu0 %1906
        %1908 = vmax.xlane.f32.xlu0 %v1849
        %v1909 = vpop.xlane.xlu0 %1908
        %1910 = vmax.xlane.f32.xlu0 %v1850
        %v1911 = vpop.xlane.xlu0 %1910
        %1912 = vmax.xlane.f32.xlu0 %v1851
        %v1913 = vpop.xlane.xlu0 %1912
        %1914 = vmax.xlane.f32.xlu0 %v1852
        %v1915 = vpop.xlane.xlu0 %1914
        %1916 = vmax.xlane.f32.xlu0 %v1853
        %v1917 = vpop.xlane.xlu0 %1916
        %v1918 = vsub.f32 %v1822, %v1855
        %v1919 = vsub.f32 %v1823, %v1857
        %v1920 = vsub.f32 %v1824, %v1859
        %v1921 = vsub.f32 %v1825, %v1861
        %v1922 = vsub.f32 %v1826, %v1863
        %v1923 = vsub.f32 %v1827, %v1865
        %v1924 = vsub.f32 %v1828, %v1867
        %v1925 = vsub.f32 %v1829, %v1869
        %v1926 = vsub.f32 %v1830, %v1871
        %v1927 = vsub.f32 %v1831, %v1873
        %v1928 = vsub.f32 %v1832, %v1875
        %v1929 = vsub.f32 %v1833, %v1877
        %v1930 = vsub.f32 %v1834, %v1879
        %v1931 = vsub.f32 %v1835, %v1881
        %v1932 = vsub.f32 %v1836, %v1883
        %v1933 = vsub.f32 %v1837, %v1885
        %v1934 = vsub.f32 %v1838, %v1887
        %v1935 = vsub.f32 %v1839, %v1889
        %v1936 = vsub.f32 %v1840, %v1891
        %v1937 = vsub.f32 %v1841, %v1893
        %v1938 = vsub.f32 %v1842, %v1895
        %v1939 = vsub.f32 %v1843, %v1897
        %v1940 = vsub.f32 %v1844, %v1899
        %v1941 = vsub.f32 %v1845, %v1901
        %v1942 = vsub.f32 %v1846, %v1903
        %v1943 = vsub.f32 %v1847, %v1905
        %v1944 = vsub.f32 %v1848, %v1907
        %v1945 = vsub.f32 %v1849, %v1909
        %v1946 = vsub.f32 %v1850, %v1911
        %v1947 = vsub.f32 %v1851, %v1913
        %v1948 = vsub.f32 %v1852, %v1915
        %v1949 = vsub.f32 %v1853, %v1917
        %v1950 = vmul.f32 %v1918, 1.442695
        %v1951 = vpow.pop %v1950
        %v1952 = vmul.f32 %v1919, 1.442695
        %v1953 = vpow.pop %v1952
        %v1954 = vmul.f32 %v1920, 1.442695
        %v1955 = vpow.pop %v1954
        %v1956 = vmul.f32 %v1921, 1.442695
        %v1957 = vpow.pop %v1956
        %v1958 = vmul.f32 %v1922, 1.442695
        %v1959 = vpow.pop %v1958
        %v1960 = vmul.f32 %v1923, 1.442695
        %v1961 = vpow.pop %v1960
        %v1962 = vmul.f32 %v1924, 1.442695
        %v1963 = vpow.pop %v1962
        %v1964 = vmul.f32 %v1925, 1.442695
        %v1965 = vpow.pop %v1964
        %v1966 = vmul.f32 %v1926, 1.442695
        %v1967 = vpow.pop %v1966
        %v1968 = vmul.f32 %v1927, 1.442695
        %v1969 = vpow.pop %v1968
        %v1970 = vmul.f32 %v1928, 1.442695
        %v1971 = vpow.pop %v1970
        %v1972 = vmul.f32 %v1929, 1.442695
        %v1973 = vpow.pop %v1972
        %v1974 = vmul.f32 %v1930, 1.442695
        %v1975 = vpow.pop %v1974
        %v1976 = vmul.f32 %v1931, 1.442695
        %v1977 = vpow.pop %v1976
        %v1978 = vmul.f32 %v1932, 1.442695
        %v1979 = vpow.pop %v1978
        %v1980 = vmul.f32 %v1933, 1.442695
        %v1981 = vpow.pop %v1980
        %v1982 = vmul.f32 %v1934, 1.442695
        %v1983 = vpow.pop %v1982
        %v1984 = vmul.f32 %v1935, 1.442695
        %v1985 = vpow.pop %v1984
        %v1986 = vmul.f32 %v1936, 1.442695
        %v1987 = vpow.pop %v1986
        %v1988 = vmul.f32 %v1937, 1.442695
        %v1989 = vpow.pop %v1988
        %v1990 = vmul.f32 %v1938, 1.442695
        %v1991 = vpow.pop %v1990
        %v1992 = vmul.f32 %v1939, 1.442695
        %v1993 = vpow.pop %v1992
        %v1994 = vmul.f32 %v1940, 1.442695
        %v1995 = vpow.pop %v1994
        %v1996 = vmul.f32 %v1941, 1.442695
        %v1997 = vpow.pop %v1996
        %v1998 = vmul.f32 %v1942, 1.442695
        %v1999 = vpow.pop %v1998
        %v2000 = vmul.f32 %v1943, 1.442695
        %v2001 = vpow.pop %v2000
        %v2002 = vmul.f32 %v1944, 1.442695
        %v2003 = vpow.pop %v2002
        %v2004 = vmul.f32 %v1945, 1.442695
        %v2005 = vpow.pop %v2004
        %v2006 = vmul.f32 %v1946, 1.442695
        %v2007 = vpow.pop %v2006
        %v2008 = vmul.f32 %v1947, 1.442695
        %v2009 = vpow.pop %v2008
        %v2010 = vmul.f32 %v1948, 1.442695
        %v2011 = vpow.pop %v2010
        %v2012 = vmul.f32 %v1949, 1.442695
        %v2013 = vpow.pop %v2012
        %2014 = vadd.xlane.f32.xlu0 %v1951
        %v2015 = vpop.xlane.xlu0 %2014
        %2016 = vadd.xlane.f32.xlu0 %v1953
        %v2017 = vpop.xlane.xlu0 %2016
        %2018 = vadd.xlane.f32.xlu0 %v1955
        %v2019 = vpop.xlane.xlu0 %2018
        %2020 = vadd.xlane.f32.xlu0 %v1957
        %v2021 = vpop.xlane.xlu0 %2020
        %2022 = vadd.xlane.f32.xlu0 %v1959
        %v2023 = vpop.xlane.xlu0 %2022
        %2024 = vadd.xlane.f32.xlu0 %v1961
        %v2025 = vpop.xlane.xlu0 %2024
        %2026 = vadd.xlane.f32.xlu0 %v1963
        %v2027 = vpop.xlane.xlu0 %2026
        %2028 = vadd.xlane.f32.xlu0 %v1965
        %v2029 = vpop.xlane.xlu0 %2028
        %2030 = vadd.xlane.f32.xlu0 %v1967
        %v2031 = vpop.xlane.xlu0 %2030
        %2032 = vadd.xlane.f32.xlu0 %v1969
        %v2033 = vpop.xlane.xlu0 %2032
        %2034 = vadd.xlane.f32.xlu0 %v1971
        %v2035 = vpop.xlane.xlu0 %2034
        %2036 = vadd.xlane.f32.xlu0 %v1973
        %v2037 = vpop.xlane.xlu0 %2036
        %2038 = vadd.xlane.f32.xlu0 %v1975
        %v2039 = vpop.xlane.xlu0 %2038
        %2040 = vadd.xlane.f32.xlu0 %v1977
        %v2041 = vpop.xlane.xlu0 %2040
        %2042 = vadd.xlane.f32.xlu0 %v1979
        %v2043 = vpop.xlane.xlu0 %2042
        %2044 = vadd.xlane.f32.xlu0 %v1981
        %v2045 = vpop.xlane.xlu0 %2044
        %2046 = vadd.xlane.f32.xlu0 %v1983
        %v2047 = vpop.xlane.xlu0 %2046
        %2048 = vadd.xlane.f32.xlu0 %v1985
        %v2049 = vpop.xlane.xlu0 %2048
        %2050 = vadd.xlane.f32.xlu0 %v1987
        %v2051 = vpop.xlane.xlu0 %2050
        %2052 = vadd.xlane.f32.xlu0 %v1989
        %v2053 = vpop.xlane.xlu0 %2052
        %2054 = vadd.xlane.f32.xlu0 %v1991
        %v2055 = vpop.xlane.xlu0 %2054
        %2056 = vadd.xlane.f32.xlu0 %v1993
        %v2057 = vpop.xlane.xlu0 %2056
        %2058 = vadd.xlane.f32.xlu0 %v1995
        %v2059 = vpop.xlane.xlu0 %2058
        %2060 = vadd.xlane.f32.xlu0 %v1997
        %v2061 = vpop.xlane.xlu0 %2060
        %2062 = vadd.xlane.f32.xlu0 %v1999
        %v2063 = vpop.xlane.xlu0 %2062
        %2064 = vadd.xlane.f32.xlu0 %v2001
        %v2065 = vpop.xlane.xlu0 %2064
        %2066 = vadd.xlane.f32.xlu0 %v2003
        %v2067 = vpop.xlane.xlu0 %2066
        %2068 = vadd.xlane.f32.xlu0 %v2005
        %v2069 = vpop.xlane.xlu0 %2068
        %2070 = vadd.xlane.f32.xlu0 %v2007
        %v2071 = vpop.xlane.xlu0 %2070
        %2072 = vadd.xlane.f32.xlu0 %v2009
        %v2073 = vpop.xlane.xlu0 %2072
        %2074 = vadd.xlane.f32.xlu0 %v2011
        %v2075 = vpop.xlane.xlu0 %2074
        %2076 = vadd.xlane.f32.xlu0 %v2013
        %v2077 = vpop.xlane.xlu0 %2076
        %v2078 = vpack.c.bf16 %v1953, %v1951
        %v2079 = vpack.c.bf16 %v1957, %v1955
        %v2080 = vpack.c.bf16 %v1961, %v1959
        %v2081 = vpack.c.bf16 %v1965, %v1963
        %v2082 = vpack.c.bf16 %v1969, %v1967
        %v2083 = vpack.c.bf16 %v1973, %v1971
        %v2084 = vpack.c.bf16 %v1977, %v1975
        %v2085 = vpack.c.bf16 %v1981, %v1979
        %v2086 = vpack.c.bf16 %v1985, %v1983
        %v2087 = vpack.c.bf16 %v1989, %v1987
        %v2088 = vpack.c.bf16 %v1993, %v1991
        %v2089 = vpack.c.bf16 %v1997, %v1995
        %v2090 = vpack.c.bf16 %v2001, %v1999
        %v2091 = vpack.c.bf16 %v2005, %v2003
        %v2092 = vpack.c.bf16 %v2009, %v2007
        %v2093 = vpack.c.bf16 %v2013, %v2011
        %2094 = vmatprep.subr.bf16.mxu0 0
        %2095 = vmatpush1.bf16.msra.mxu0 %v1552
        %2096 = vmatprep.subr.bf16.mxu0 0
        %2097 = vmatpush1.bf16.msra.mxu0 %v1551
        %2098 = vmatprep.subr.bf16.mxu0 0
        %2099 = vmatpush1.bf16.msra.mxu0 %v1550
        %2100 = vmatprep.subr.bf16.mxu0 0
        %2101 = vmatpush1.bf16.msra.mxu0 %v1549
        %2102 = vmatprep.subr.bf16.mxu0 0
        %2103 = vmatpush1.bf16.msra.mxu0 %v1548
        %2104 = vmatprep.subr.bf16.mxu0 0
        %2105 = vmatpush1.bf16.msra.mxu0 %v1547
        %2106 = vmatprep.subr.bf16.mxu0 0
        %2107 = vmatpush1.bf16.msra.mxu0 %v1546
        %2108 = vmatprep.subr.bf16.mxu0 0
        %2109 = vmatpush1.bf16.msra.mxu0 %v1545
        %2110 = vmatprep.subr.bf16.mxu0 0
        %2111 = vmatpush2.bf16.msra.mxu0 0
        %2112 = vmatprep.subr.bf16.mxu0 0
        %2113 = vmatpush2.bf16.msra.mxu0 0
        %2114 = vmatprep.subr.bf16.mxu0 0
        %2115 = vmatpush2.bf16.msra.mxu0 0
        %2116 = vmatprep.subr.bf16.mxu0 0
        %2117 = vmatpush2.bf16.msra.mxu0 0
        %2118 = vmatprep.subr.bf16.mxu0 0
        %2119 = vmatpush2.bf16.msra.mxu0 0
        %2120 = vmatprep.subr.bf16.mxu0 0
        %2121 = vmatpush2.bf16.msra.mxu0 0
        %2122 = vmatprep.subr.bf16.mxu0 0
        %2123 = vmatpush2.bf16.msra.mxu0 0
        %2124 = vmatprep.subr.bf16.mxu0 0
        %2125 = vmatpush2.bf16.msra.mxu0 0
        %2126 = vmatprep.mubr.bf16.mxu0 0
        %2127 = vmatmul.mubr.bf16.gmra.mxu0 %v2078
        %v2128 = vpop.f32.mrf.mxu0
        %v2129 = vadd.f32 0.0, %v2128
        %v2130 = vpop.f32.mrf.mxu0
        %v2131 = vpop.f32.mrf.mxu0
        %v2132 = vadd.f32 0.0, %v2131
        %v2133 = vpop.f32.mrf.mxu0
        %2134 = vmatprep.mubr.bf16.mxu0 0
        %2135 = vmatmul.mubr.bf16.gmra.mxu0 %v2079
        %v2136 = vpop.f32.mrf.mxu0
        %v2137 = vadd.f32 0.0, %v2136
        %v2138 = vpop.f32.mrf.mxu0
        %v2139 = vpop.f32.mrf.mxu0
        %v2140 = vadd.f32 0.0, %v2139
        %v2141 = vpop.f32.mrf.mxu0
        %2142 = vmatprep.mubr.bf16.mxu0 0
        %2143 = vmatmul.mubr.bf16.gmra.mxu0 %v2080
        %v2144 = vpop.f32.mrf.mxu0
        %v2145 = vadd.f32 0.0, %v2144
        %v2146 = vpop.f32.mrf.mxu0
        %v2147 = vpop.f32.mrf.mxu0
        %v2148 = vadd.f32 0.0, %v2147
        %v2149 = vpop.f32.mrf.mxu0
        %2150 = vmatprep.mubr.bf16.mxu0 0
        %2151 = vmatmul.mubr.bf16.gmra.mxu0 %v2081
        %v2152 = vpop.f32.mrf.mxu0
        %v2153 = vadd.f32 0.0, %v2152
        %v2154 = vpop.f32.mrf.mxu0
        %v2155 = vpop.f32.mrf.mxu0
        %v2156 = vadd.f32 0.0, %v2155
        %v2157 = vpop.f32.mrf.mxu0
        %2158 = vmatprep.mubr.bf16.mxu0 0
        %2159 = vmatmul.mubr.bf16.gmra.mxu0 %v2082
        %v2160 = vpop.f32.mrf.mxu0
        %v2161 = vadd.f32 0.0, %v2160
        %v2162 = vpop.f32.mrf.mxu0
        %v2163 = vpop.f32.mrf.mxu0
        %v2164 = vadd.f32 0.0, %v2163
        %v2165 = vpop.f32.mrf.mxu0
        %2166 = vmatprep.mubr.bf16.mxu0 0
        %2167 = vmatmul.mubr.bf16.gmra.mxu0 %v2083
        %v2168 = vpop.f32.mrf.mxu0
        %v2169 = vadd.f32 0.0, %v2168
        %v2170 = vpop.f32.mrf.mxu0
        %v2171 = vpop.f32.mrf.mxu0
        %v2172 = vadd.f32 0.0, %v2171
        %v2173 = vpop.f32.mrf.mxu0
        %2174 = vmatprep.mubr.bf16.mxu0 0
        %2175 = vmatmul.mubr.bf16.gmra.mxu0 %v2084
        %v2176 = vpop.f32.mrf.mxu0
        %v2177 = vadd.f32 0.0, %v2176
        %v2178 = vpop.f32.mrf.mxu0
        %v2179 = vpop.f32.mrf.mxu0
        %v2180 = vadd.f32 0.0, %v2179
        %v2181 = vpop.f32.mrf.mxu0
        %2182 = vmatprep.mubr.bf16.mxu0 0
        %2183 = vmatmul.mubr.bf16.gmra.mxu0 %v2085
        %v2184 = vpop.f32.mrf.mxu0
        %v2185 = vadd.f32 0.0, %v2184
        %v2186 = vpop.f32.mrf.mxu0
        %v2187 = vpop.f32.mrf.mxu0
        %v2188 = vadd.f32 0.0, %v2187
        %v2189 = vpop.f32.mrf.mxu0
        %2190 = vdwg.mxu0
        %2191 = vmatprep.subr.bf16.mxu0 0
        %2192 = vmatpush1.bf16.msra.mxu0 %v1560
        %2193 = vmatprep.subr.bf16.mxu0 0
        %2194 = vmatpush1.bf16.msra.mxu0 %v1559
        %2195 = vmatprep.subr.bf16.mxu0 0
        %2196 = vmatpush1.bf16.msra.mxu0 %v1558
        %2197 = vmatprep.subr.bf16.mxu0 0
        %2198 = vmatpush1.bf16.msra.mxu0 %v1557
        %2199 = vmatprep.subr.bf16.mxu0 0
        %2200 = vmatpush1.bf16.msra.mxu0 %v1556
        %2201 = vmatprep.subr.bf16.mxu0 0
        %2202 = vmatpush1.bf16.msra.mxu0 %v1555
        %2203 = vmatprep.subr.bf16.mxu0 0
        %2204 = vmatpush1.bf16.msra.mxu0 %v1554
        %2205 = vmatprep.subr.bf16.mxu0 0
        %2206 = vmatpush1.bf16.msra.mxu0 %v1553
        %2207 = vmatprep.subr.bf16.mxu0 0
        %2208 = vmatpush2.bf16.msra.mxu0 0
        %2209 = vmatprep.subr.bf16.mxu0 0
        %2210 = vmatpush2.bf16.msra.mxu0 0
        %2211 = vmatprep.subr.bf16.mxu0 0
        %2212 = vmatpush2.bf16.msra.mxu0 0
        %2213 = vmatprep.subr.bf16.mxu0 0
        %2214 = vmatpush2.bf16.msra.mxu0 0
        %2215 = vmatprep.subr.bf16.mxu0 0
        %2216 = vmatpush2.bf16.msra.mxu0 0
        %2217 = vmatprep.subr.bf16.mxu0 0
        %2218 = vmatpush2.bf16.msra.mxu0 0
        %2219 = vmatprep.subr.bf16.mxu0 0
        %2220 = vmatpush2.bf16.msra.mxu0 0
        %2221 = vmatprep.subr.bf16.mxu0 0
        %2222 = vmatpush2.bf16.msra.mxu0 0
        %2223 = vmatprep.mubr.bf16.mxu0 0
        %2224 = vmatmul.mubr.bf16.gmra.mxu0 %v2086
        %v2225 = vpop.f32.mrf.mxu0
        %v2226 = vadd.f32 0.0, %v2225
        %v2227 = vpop.f32.mrf.mxu0
        %v2228 = vpop.f32.mrf.mxu0
        %v2229 = vadd.f32 0.0, %v2228
        %v2230 = vpop.f32.mrf.mxu0
        %2231 = vmatprep.mubr.bf16.mxu0 0
        %2232 = vmatmul.mubr.bf16.gmra.mxu0 %v2087
        %v2233 = vpop.f32.mrf.mxu0
        %v2234 = vadd.f32 0.0, %v2233
        %v2235 = vpop.f32.mrf.mxu0
        %v2236 = vpop.f32.mrf.mxu0
        %v2237 = vadd.f32 0.0, %v2236
        %v2238 = vpop.f32.mrf.mxu0
        %2239 = vmatprep.mubr.bf16.mxu0 0
        %2240 = vmatmul.mubr.bf16.gmra.mxu0 %v2088
        %v2241 = vpop.f32.mrf.mxu0
        %v2242 = vadd.f32 0.0, %v2241
        %v2243 = vpop.f32.mrf.mxu0
        %v2244 = vpop.f32.mrf.mxu0
        %v2245 = vadd.f32 0.0, %v2244
        %v2246 = vpop.f32.mrf.mxu0
        %2247 = vmatprep.mubr.bf16.mxu0 0
        %2248 = vmatmul.mubr.bf16.gmra.mxu0 %v2089
        %v2249 = vpop.f32.mrf.mxu0
        %v2250 = vadd.f32 0.0, %v2249
        %v2251 = vpop.f32.mrf.mxu0
        %v2252 = vpop.f32.mrf.mxu0
        %v2253 = vadd.f32 0.0, %v2252
        %v2254 = vpop.f32.mrf.mxu0
        %2255 = vmatprep.mubr.bf16.mxu0 0
        %2256 = vmatmul.mubr.bf16.gmra.mxu0 %v2090
        %v2257 = vpop.f32.mrf.mxu0
        %v2258 = vadd.f32 0.0, %v2257
        %v2259 = vpop.f32.mrf.mxu0
        %v2260 = vpop.f32.mrf.mxu0
        %v2261 = vadd.f32 0.0, %v2260
        %v2262 = vpop.f32.mrf.mxu0
        %2263 = vmatprep.mubr.bf16.mxu0 0
        %2264 = vmatmul.mubr.bf16.gmra.mxu0 %v2091
        %v2265 = vpop.f32.mrf.mxu0
        %v2266 = vadd.f32 0.0, %v2265
        %v2267 = vpop.f32.mrf.mxu0
        %v2268 = vpop.f32.mrf.mxu0
        %v2269 = vadd.f32 0.0, %v2268
        %v2270 = vpop.f32.mrf.mxu0
        %2271 = vmatprep.mubr.bf16.mxu0 0
        %2272 = vmatmul.mubr.bf16.gmra.mxu0 %v2092
        %v2273 = vpop.f32.mrf.mxu0
        %v2274 = vadd.f32 0.0, %v2273
        %v2275 = vpop.f32.mrf.mxu0
        %v2276 = vpop.f32.mrf.mxu0
        %v2277 = vadd.f32 0.0, %v2276
        %v2278 = vpop.f32.mrf.mxu0
        %2279 = vmatprep.mubr.bf16.mxu0 0
        %2280 = vmatmul.mubr.bf16.gmra.mxu0 %v2093
        %v2281 = vpop.f32.mrf.mxu0
        %v2282 = vadd.f32 0.0, %v2281
        %v2283 = vpop.f32.mrf.mxu0
        %v2284 = vpop.f32.mrf.mxu0
        %v2285 = vadd.f32 0.0, %v2284
        %v2286 = vpop.f32.mrf.mxu0
        %2287 = vdwg.mxu0
        %v2288 = vrcp.pop %v2015
        %v2289 = vrcp.pop %v2017
        %v2290 = vrcp.pop %v2019
        %v2291 = vrcp.pop %v2021
        %v2292 = vrcp.pop %v2023
        %v2293 = vrcp.pop %v2025
        %v2294 = vrcp.pop %v2027
        %v2295 = vrcp.pop %v2029
        %v2296 = vrcp.pop %v2031
        %v2297 = vrcp.pop %v2033
        %v2298 = vrcp.pop %v2035
        %v2299 = vrcp.pop %v2037
        %v2300 = vrcp.pop %v2039
        %v2301 = vrcp.pop %v2041
        %v2302 = vrcp.pop %v2043
        %v2303 = vrcp.pop %v2045
        %v2304 = vrcp.pop %v2047
        %v2305 = vrcp.pop %v2049
        %v2306 = vrcp.pop %v2051
        %v2307 = vrcp.pop %v2053
        %v2308 = vrcp.pop %v2055
        %v2309 = vrcp.pop %v2057
        %v2310 = vrcp.pop %v2059
        %v2311 = vrcp.pop %v2061
        %v2312 = vrcp.pop %v2063
        %v2313 = vrcp.pop %v2065
        %v2314 = vrcp.pop %v2067
        %v2315 = vrcp.pop %v2069
        %v2316 = vrcp.pop %v2071
        %v2317 = vrcp.pop %v2073
        %v2318 = vrcp.pop %v2075
        %v2319 = vrcp.pop %v2077
        %v2320 = vmul.f32 %v2129, %v2288
        %v2321 = vmul.f32 %v2132, %v2289
        %v2322 = vmul.f32 %v2137, %v2290
        %v2323 = vmul.f32 %v2140, %v2291
        %v2324 = vmul.f32 %v2145, %v2292
        %v2325 = vmul.f32 %v2148, %v2293
        %v2326 = vmul.f32 %v2153, %v2294
        %v2327 = vmul.f32 %v2156, %v2295
        %v2328 = vmul.f32 %v2161, %v2296
        %v2329 = vmul.f32 %v2164, %v2297
        %v2330 = vmul.f32 %v2169, %v2298
        %v2331 = vmul.f32 %v2172, %v2299
        %v2332 = vmul.f32 %v2177, %v2300
        %v2333 = vmul.f32 %v2180, %v2301
        %v2334 = vmul.f32 %v2185, %v2302
        %v2335 = vmul.f32 %v2188, %v2303
        %v2336 = vmul.f32 %v2226, %v2304
        %v2337 = vmul.f32 %v2229, %v2305
        %v2338 = vmul.f32 %v2234, %v2306
        %v2339 = vmul.f32 %v2237, %v2307
        %v2340 = vmul.f32 %v2242, %v2308
        %v2341 = vmul.f32 %v2245, %v2309
        %v2342 = vmul.f32 %v2250, %v2310
        %v2343 = vmul.f32 %v2253, %v2311
        %v2344 = vmul.f32 %v2258, %v2312
        %v2345 = vmul.f32 %v2261, %v2313
        %v2346 = vmul.f32 %v2266, %v2314
        %v2347 = vmul.f32 %v2269, %v2315
        %v2348 = vmul.f32 %v2274, %v2316
        %v2349 = vmul.f32 %v2277, %v2317
        %v2350 = vmul.f32 %v2282, %v2318
        %v2351 = vmul.f32 %v2285, %v2319
        %v2352 = vpack.c.bf16 %v2321, %v2320
        %v2353 = vpack.c.bf16 %v2323, %v2322
        %v2354 = vpack.c.bf16 %v2325, %v2324
        %v2355 = vpack.c.bf16 %v2327, %v2326
        %v2356 = vpack.c.bf16 %v2329, %v2328
        %v2357 = vpack.c.bf16 %v2331, %v2330
        %v2358 = vpack.c.bf16 %v2333, %v2332
        %v2359 = vpack.c.bf16 %v2335, %v2334
        %v2360 = vpack.c.bf16 %v2337, %v2336
        %v2361 = vpack.c.bf16 %v2339, %v2338
        %v2362 = vpack.c.bf16 %v2341, %v2340
        %v2363 = vpack.c.bf16 %v2343, %v2342
        %v2364 = vpack.c.bf16 %v2345, %v2344
        %v2365 = vpack.c.bf16 %v2347, %v2346
        %v2366 = vpack.c.bf16 %v2349, %v2348
        %v2367 = vpack.c.bf16 %v2351, %v2350
        %v2384 = vunpack.c.l.b16 %v2352
        %v2385 = vunpack.c.h.b16 %v2352
        %v2386 = vunpack.c.l.b16 %v2353
        %v2387 = vunpack.c.h.b16 %v2353
        %v2388 = vunpack.c.l.b16 %v2354
        %v2389 = vunpack.c.h.b16 %v2354
        %v2390 = vunpack.c.l.b16 %v2355
        %v2391 = vunpack.c.h.b16 %v2355
        %v2392 = vunpack.c.l.b16 %v2356
        %v2393 = vunpack.c.h.b16 %v2356
        %v2394 = vunpack.c.l.b16 %v2357
        %v2395 = vunpack.c.h.b16 %v2357
        %v2396 = vunpack.c.l.b16 %v2358
        %v2397 = vunpack.c.h.b16 %v2358
        %v2398 = vunpack.c.l.b16 %v2359
        %v2399 = vunpack.c.h.b16 %v2359
        %v2400 = vunpack.c.l.b16 %v2360
        %v2401 = vunpack.c.h.b16 %v2360
        %v2402 = vunpack.c.l.b16 %v2361
        %v2403 = vunpack.c.h.b16 %v2361
        %v2404 = vunpack.c.l.b16 %v2362
        %v2405 = vunpack.c.h.b16 %v2362
        %v2406 = vunpack.c.l.b16 %v2363
        %v2407 = vunpack.c.h.b16 %v2363
        %v2408 = vunpack.c.l.b16 %v2364
        %v2409 = vunpack.c.h.b16 %v2364
        %v2410 = vunpack.c.l.b16 %v2365
        %v2411 = vunpack.c.h.b16 %v2365
        %v2412 = vunpack.c.l.b16 %v2366
        %v2413 = vunpack.c.h.b16 %v2366
        %v2414 = vunpack.c.l.b16 %v2367
        %v2415 = vunpack.c.h.b16 %v2367
        %v2416 = vpack.c.b16 %v2384, %v2384
        %v2417 = vpack.c.b16 %v2385, %v2385
        %v2418 = vpack.c.b16 %v2386, %v2386
        %v2419 = vpack.c.b16 %v2387, %v2387
        %v2420 = vpack.c.b16 %v2388, %v2388
        %v2421 = vpack.c.b16 %v2389, %v2389
        %v2422 = vpack.c.b16 %v2390, %v2390
        %v2423 = vpack.c.b16 %v2391, %v2391
        %v2424 = vpack.c.b16 %v2392, %v2392
        %v2425 = vpack.c.b16 %v2393, %v2393
        %v2426 = vpack.c.b16 %v2394, %v2394
        %v2427 = vpack.c.b16 %v2395, %v2395
        %v2428 = vpack.c.b16 %v2396, %v2396
        %v2429 = vpack.c.b16 %v2397, %v2397
        %v2430 = vpack.c.b16 %v2398, %v2398
        %v2431 = vpack.c.b16 %v2399, %v2399
        %v2432 = vpack.c.b16 %v2400, %v2400
        %v2433 = vpack.c.b16 %v2401, %v2401
        %v2434 = vpack.c.b16 %v2402, %v2402
        %v2435 = vpack.c.b16 %v2403, %v2403
        %v2436 = vpack.c.b16 %v2404, %v2404
        %v2437 = vpack.c.b16 %v2405, %v2405
        %v2438 = vpack.c.b16 %v2406, %v2406
        %v2439 = vpack.c.b16 %v2407, %v2407
        %v2440 = vpack.c.b16 %v2408, %v2408
        %v2441 = vpack.c.b16 %v2409, %v2409
        %v2442 = vpack.c.b16 %v2410, %v2410
        %v2443 = vpack.c.b16 %v2411, %v2411
        %v2444 = vpack.c.b16 %v2412, %v2412
        %v2445 = vpack.c.b16 %v2413, %v2413
        %v2446 = vpack.c.b16 %v2414, %v2414
        %v2447 = vpack.c.b16 %v2415, %v2415
        %2480 = vst [vmem:[%s177] sm:$0xf] %v2416
        %2481 = vst [vmem:[%s177 + $0x4] sm:$0xf] %v2417
        %2482 = vst [vmem:[%s177 + $0x8] sm:$0xf] %v2418
        %2483 = vst [vmem:[%s177 + $0xc] sm:$0xf] %v2419
        %2484 = vst [vmem:[%s177 + $0x10] sm:$0xf] %v2420
        %2485 = vst [vmem:[%s177 + $0x14] sm:$0xf] %v2421
        %2486 = vst [vmem:[%s177 + $0x18] sm:$0xf] %v2422
        %2487 = vst [vmem:[%s177 + $0x1c] sm:$0xf] %v2423
        %2488 = vst [vmem:[%s177 + $0x20] sm:$0xf] %v2424
        %2489 = vst [vmem:[%s177 + $0x24] sm:$0xf] %v2425
        %2490 = vst [vmem:[%s177 + $0x28] sm:$0xf] %v2426
        %2491 = vst [vmem:[%s177 + $0x2c] sm:$0xf] %v2427
        %2492 = vst [vmem:[%s177 + $0x30] sm:$0xf] %v2428
        %2493 = vst [vmem:[%s177 + $0x34] sm:$0xf] %v2429
        %2494 = vst [vmem:[%s177 + $0x38] sm:$0xf] %v2430
        %2495 = vst [vmem:[%s177 + $0x3c] sm:$0xf] %v2431
        %2496 = vst [vmem:[%s177 + $0x40] sm:$0xf] %v2432
        %2497 = vst [vmem:[%s177 + $0x44] sm:$0xf] %v2433
        %2498 = vst [vmem:[%s177 + $0x48] sm:$0xf] %v2434
        %2499 = vst [vmem:[%s177 + $0x4c] sm:$0xf] %v2435
        %2500 = vst [vmem:[%s177 + $0x50] sm:$0xf] %v2436
        %2501 = vst [vmem:[%s177 + $0x54] sm:$0xf] %v2437
        %2502 = vst [vmem:[%s177 + $0x58] sm:$0xf] %v2438
        %2503 = vst [vmem:[%s177 + $0x5c] sm:$0xf] %v2439
        %2504 = vst [vmem:[%s177 + $0x60] sm:$0xf] %v2440
        %2505 = vst [vmem:[%s177 + $0x64] sm:$0xf] %v2441
        %2506 = vst [vmem:[%s177 + $0x68] sm:$0xf] %v2442
        %2507 = vst [vmem:[%s177 + $0x6c] sm:$0xf] %v2443
        %2508 = vst [vmem:[%s177 + $0x70] sm:$0xf] %v2444
        %2509 = vst [vmem:[%s177 + $0x74] sm:$0xf] %v2445
        %2510 = vst [vmem:[%s177 + $0x78] sm:$0xf] %v2446
        %2511 = vst [vmem:[%s177 + $0x7c] sm:$0xf] %v2447
        %s2512 = sand.u32 %s75, 1
        %s2513 = scalar_lea.sflag [#allocation4], %s2512
        %s2514 = sand.u32 %s75, 1
        %s2515 = smul.addr %s2514, 128
        %s2516 = scalar_lea.vmem [#allocation7], %s2515
        // Predicated region
        $region37: #{tpu_custom_call.1} parent=27 // pred_check
          %p2517 = pneg %p85
        $region38: #{tpu_custom_call.1} parent=27 // pred_check_branch
          %2519 = sbr.rel (%p2517) target = $region40
        $region39: #{tpu_custom_call.1} parent=27 // pred_region
          %s2520 = smul.u32 2, %s20
          %s2522 = ssub.s32 2048, 2048
          %2523 = vsyncadd %s2513, %s2522
          %s2524 = smul.addr %s2520, 16
          %s2525 = smul.addr %s2524, 64
          %s2526 = scalar_lea.hbm %s2, %s2525
          %s2527 = sshll.u32 %s2516, 4
          %s2528 = int_to_ptr.vmem [resolvable:$true] %s2527
          %2533 = dma.vmem_to_hbm [thread:$0]  %s2528, 2048, %s2526, %s2513, 64, 64, 4
        $region40: #{tpu_custom_call.1} parent=27 // pred_fallthru
          _
      $region28: #{tpu_custom_call.1} parent=5 // pred_fallthru
        _
      %p2534 = scmp.le.s32.totalorder 2, %s15
      // Predicated region
      $region41: #{tpu_custom_call.1} parent=5 // pred_check
        %p2535 = pneg %p2534
      $region42: #{tpu_custom_call.1} parent=5 // pred_check_branch
        %2537 = sbr.rel (%p2535) target = $region44
      $region43: #{tpu_custom_call.1} parent=5 // pred_region
        %s2538 = ssub.s32 %s15, 2
        // Predicated region
        $region45: #{tpu_custom_call.1} parent=43 // pred_check
          %p2539 = pneg %p91
        $region46: #{tpu_custom_call.1} parent=43 // pred_check_branch
          %2541 = sbr.rel (%p2539) target = $region48
        $region47: #{tpu_custom_call.1} parent=43 // pred_region
          %s2542 = sand.u32 %s76, 1
          %s2543 = scalar_lea.sflag [#allocation4], %s2542
          %s2544 = sand.u32 %s76, 1
          %s2545 = smul.addr %s2544, 128
          %s2546 = scalar_lea.vmem [#allocation7], %s2545
          %2547 = dma.done %s2543, 2048
        $region48: #{tpu_custom_call.1} parent=43 // pred_fallthru
          _
      $region44: #{tpu_custom_call.1} parent=5 // pred_fallthru
        _
    $region6: #{tpu_custom_call.1} parent=1 // loop_footer
      %s19 = sadd.s32 1, %s15
    $region7: #{tpu_custom_call.1} parent=1 // loop_footer_branch
      %14 = sbr.rel target = $region3
    $region8: #{tpu_custom_call.1} parent=1 // loop_exit
      _
    %2548 = vsyncpa [#allocation3], 1
    %s2549 = scalar_lea.sflag [#allocation3], 1
    %2550 = vsyncpa %s2549, 1
    %2551 = vsyncpa [#allocation6], 1
    %2552 = vsyncpa [#allocation4], 1
    %s2553 = scalar_lea.sflag [#allocation4], 1
    %2554 = vsyncpa %s2553, 1

</llo_original>
